<compile_context>
chip_gen: v7x
topology: tpu7x:2x2x1
jax: 0.10.0
libtpu: 0.0.40
codegen_flags: <defaults>
</compile_context>

<pallas_src>
import functools
import math

import jax
import jax.numpy as jnp
from jax import lax
from jax.experimental import pallas as pl
from jax.experimental.pallas import tpu as pltpu


def _round_up(x, m):
    return (x + m - 1) // m * m


# ----------------------------------------------------------------------------
# LSTM layer kernel.
# Grid: time chunks. h/c carried in f32 VMEM scratch across chunks.
# PyTorch gate order: i, f, g, o.
# ----------------------------------------------------------------------------
def _lstm_layer_kernel(x_ref, h0_ref, c0_ref, wih_ref, whh_ref, b_ref,
                       y_ref, hT_ref, cT_ref,
                       gx_ref, h_sc, c_sc, *, H, TT, T_total):
    chunk = pl.program_id(0)

    @pl.when(chunk == 0)
    def _():
        h_sc[...] = h0_ref[...].astype(jnp.float32)
        c_sc[...] = c0_ref[...].astype(jnp.float32)

    # Time-parallel input projection: one big (TT*B, D) @ (D, 4H) MXU matmul for
    # the whole chunk instead of a tiny (B, D) matmul inside the recurrent loop.
    xc = x_ref[...]                                            # (TT, B, D) bf16
    B = xc.shape[1]
    x2d = xc.reshape(TT * B, xc.shape[2])
    gx = jnp.dot(x2d, wih_ref[...], preferred_element_type=jnp.float32)
    gx_ref[...] = gx.reshape(TT, B, 4 * H)                     # f32 pre-gates

    # Number of valid steps in this chunk (last chunk may be partial).
    steps = jnp.minimum(TT, T_total - chunk * TT)

    def step(t, carry):
        h = h_sc[...]                                          # (B, H) f32
        c = c_sc[...]                                          # (B, H) f32
        # Single recurrent matmul per step (bf16 operands, f32 accumulate).
        gates = (gx_ref[t]
                 + jnp.dot(h.astype(whh_ref.dtype), whh_ref[...],
                           preferred_element_type=jnp.float32)
                 + b_ref[...])                                 # (B, 4H) f32

        # Gate math in f32 (v5e has no bf16 VPU/EUP).  With H a multiple of 128
        # these slices are lane-aligned re-views of the gate accumulator.
        i = jax.nn.sigmoid(gates[:, 0 * H:1 * H])
        f = jax.nn.sigmoid(gates[:, 1 * H:2 * H])
        g = jnp.tanh(gates[:, 2 * H:3 * H])
        o = jax.nn.sigmoid(gates[:, 3 * H:4 * H])

        c_new = f * c + i * g
        h_new = o * jnp.tanh(c_new)

        h_sc[...] = h_new
        c_sc[...] = c_new
        y_ref[t] = h_new.astype(y_ref.dtype)
        return carry

    lax.fori_loop(0, steps, step, 0)

    # Final hidden/cell state: written once per chunk (resident output block),
    # never inside the recurrent loop.
    hT_ref[...] = h_sc[...].astype(hT_ref.dtype)
    cT_ref[...] = c_sc[...].astype(cT_ref.dtype)


def lstm_layer(x, h0, c0, wih, whh, b, *, time_chunk=128):
    """x: (T, B, D) bf16; h0/c0: (B, H) f32; wih: (D, 4H) bf16; whh: (H, 4H) bf16;
    b: (1, 4H) f32 (b_ih + b_hh).  Returns (y (T,B,H) bf16, hT, cT)."""
    T, B, D = x.shape
    H = h0.shape[-1]
    TT = min(time_chunk, T)                 # time steps per grid iteration
    n_chunks = pl.cdiv(T, TT)

    kernel = functools.partial(_lstm_layer_kernel, H=H, TT=TT, T_total=T)

    # NOTE: the constant-index weight blocks (h0, c0, wih, whh, b) are small here
    # and the grid is only a handful of time chunks, so default double buffering
    # costs little.  For large nhid on v7x (64 MiB VMEM), single-buffer them
    # (pipeline_mode=pl.Buffered(1)) and/or tile the 4H axis, and set
    # vmem_limit_bytes explicitly.
    # TODO(synk): fuse all nlayers into one kernel (activations resident in VMEM,
    # weights DMA'd per layer) to remove the per-layer HBM round trip of y.
    y, hT, cT = pl.pallas_call(
        kernel,
        out_shape=(jax.ShapeDtypeStruct((T, B, H), x.dtype),
                   jax.ShapeDtypeStruct((B, H), h0.dtype),
                   jax.ShapeDtypeStruct((B, H), c0.dtype)),
        grid_spec=pltpu.PrefetchScalarGridSpec(
            num_scalar_prefetch=0,
            grid=(n_chunks,),
            in_specs=[
                pl.BlockSpec((TT, B, D), lambda t: (t, 0, 0)),
                pl.BlockSpec((B, H), lambda t: (0, 0)),
                pl.BlockSpec((B, H), lambda t: (0, 0)),
                pl.BlockSpec((D, 4 * H), lambda t: (0, 0)),
                pl.BlockSpec((H, 4 * H), lambda t: (0, 0)),
                pl.BlockSpec((1, 4 * H), lambda t: (0, 0)),
            ],
            out_specs=[
                pl.BlockSpec((TT, B, H), lambda t: (t, 0, 0)),
                pl.BlockSpec((B, H), lambda t: (0, 0)),
                pl.BlockSpec((B, H), lambda t: (0, 0)),
            ],
            scratch_shapes=[
                pltpu.VMEM((TT, B, 4 * H), jnp.float32),   # chunk pre-gates x@Wih
                pltpu.VMEM((B, H), jnp.float32),           # h carry
                pltpu.VMEM((B, H), jnp.float32),           # c carry
            ],
        ),
        compiler_params=pltpu.CompilerParams(
            dimension_semantics=("arbitrary",)),           # time recurrence
    )(x, h0, c0, wih, whh, b)
    return y, hT, cT


# ----------------------------------------------------------------------------
# Decoder kernel: logits = x @ W + b, log_softmax over vocab.
# Grid = (row blocks [parallel], vocab blocks [arbitrary]).  The output row-block
# (full padded vocab width) stays resident in VMEM across the vocab axis; raw
# logits are streamed in per vocab chunk with an online max / sum-exp, and the
# normalization (subtract logsumexp) is applied once on the final vocab chunk.
# ----------------------------------------------------------------------------
def _decoder_kernel(x_ref, w_ref, b_ref, out_ref, m_sc, l_sc, *, TV, NV):
    j = pl.program_id(1)

    @pl.when(j == 0)
    def _():
        m_sc[...] = jnp.full_like(m_sc[...], -jnp.inf)
        l_sc[...] = jnp.zeros_like(l_sc[...])

    logits = (jnp.dot(x_ref[...], w_ref[...], preferred_element_type=jnp.float32)
              + b_ref[...])                                    # (TN, TV) f32

    # Online max / logsumexp accumulation.
    m_prev = m_sc[...]
    m_new = jnp.maximum(m_prev, jnp.max(logits, axis=-1, keepdims=True))
    l_sc[...] = (l_sc[...] * jnp.exp(m_prev - m_new)
                 + jnp.sum(jnp.exp(logits - m_new), axis=-1, keepdims=True))
    m_sc[...] = m_new

    # Stash raw logits into the resident output block.  Static dispatch over the
    # (static) number of vocab chunks keeps every lane offset static.
    for k in range(NV):
        @pl.when(j == k)
        def _(k=k):
            out_ref[:, k * TV:(k + 1) * TV] = logits.astype(out_ref.dtype)

    @pl.when(j == NV - 1)
    def _():
        lse = m_sc[...] + jnp.log(l_sc[...])                   # (TN, 1)
        out_ref[...] = (out_ref[...] - lse).astype(out_ref.dtype)


def decoder_log_softmax(x, w, b, *, row_block=128, vocab_block=256):
    """x: (N, H) bf16; w: (H, V) bf16; b: (1, V) f32 -> (N, V) f32 log-probs."""
    N, H = x.shape
    V = w.shape[-1]

    TN = min(row_block, _round_up(N, 8))
    NP = _round_up(N, TN)
    VP = _round_up(V, 128)
    TV = vocab_block
    while VP % TV != 0:                                        # falls back to 128
        TV //= 2
    NV = VP // TV

    if NP != N:
        x = jnp.pad(x, ((0, NP - N), (0, 0)))
    if VP != V:
        w = jnp.pad(w, ((0, 0), (0, VP - V)))
        # Padded vocab columns get a huge negative bias so exp() underflows to 0
        # and they never perturb the logsumexp.
        b = jnp.pad(b, ((0, 0), (0, VP - V)), constant_values=-1e30)

    kernel = functools.partial(_decoder_kernel, TV=TV, NV=NV)
    out = pl.pallas_call(
        kernel,
        out_shape=jax.ShapeDtypeStruct((NP, VP), jnp.float32),
        grid_spec=pltpu.PrefetchScalarGridSpec(
            num_scalar_prefetch=0,
            grid=(NP // TN, NV),
            in_specs=[
                pl.BlockSpec((TN, H), lambda i, j: (i, 0)),
                pl.BlockSpec((H, TV), lambda i, j: (0, j)),
                pl.BlockSpec((1, TV), lambda i, j: (0, j)),
            ],
            out_specs=pl.BlockSpec((TN, VP), lambda i, j: (i, 0)),
            scratch_shapes=[pltpu.VMEM((TN, 1), jnp.float32),   # running max
                            pltpu.VMEM((TN, 1), jnp.float32)],  # running sum-exp
        ),
        compiler_params=pltpu.CompilerParams(
            dimension_semantics=("parallel", "arbitrary")),     # rows shard on v7x
    )(x, w, b)

    if NP != N or VP != V:
        out = out[:N, :V]
    return out


# ----------------------------------------------------------------------------
# Model: parameter construction + forward glue.
# ----------------------------------------------------------------------------
class RNNModelPallas:
    def __init__(self, rnn_type, ntoken, ninp, nhid, nlayers, key):
        if rnn_type != "LSTM":
            # TODO(synk): GRU branch of the PyTorch module is not implemented here.
            raise ValueError("Only LSTM is implemented in this Pallas port.")
        self.rnn_type = rnn_type
        self.ntoken = ntoken
        self.ninp = ninp
        self.nhid = nhid
        self.nlayers = nlayers

        keys = jax.random.split(key, 3 + 4 * nlayers)
        initrange = 0.1
        # encoder: uniform(-0.1, 0.1)   (kept f32; gathered rows cast to bf16)
        self.encoder_w = jax.random.uniform(
            keys[0], (ntoken, ninp), jnp.float32, -initrange, initrange)

        # LSTM params: PyTorch layout (4H, D) stored pre-transposed as (D, 4H),
        # weights in bf16 for the MXU, fused bias (b_ih + b_hh) in f32.
        stdv = 1.0 / math.sqrt(nhid)
        self.lstm_params = []
        for l in range(nlayers):
            d_in = ninp if l == 0 else nhid
            k_ih, k_hh, k_bi, k_bh = keys[3 + 4 * l: 3 + 4 * l + 4]
            wih = jax.random.uniform(k_ih, (d_in, 4 * nhid), jnp.float32,
                                     -stdv, stdv).astype(jnp.bfloat16)
            whh = jax.random.uniform(k_hh, (nhid, 4 * nhid), jnp.float32,
                                     -stdv, stdv).astype(jnp.bfloat16)
            b_ih = jax.random.uniform(k_bi, (4 * nhid,), jnp.float32, -stdv, stdv)
            b_hh = jax.random.uniform(k_bh, (4 * nhid,), jnp.float32, -stdv, stdv)
            b = (b_ih + b_hh).reshape(1, 4 * nhid)
            self.lstm_params.append((wih, whh, b))

        # decoder: weight uniform(-0.1, 0.1), bias = default Linear init.
        self.decoder_w = jax.random.uniform(
            keys[1], (nhid, ntoken), jnp.float32,
            -initrange, initrange).astype(jnp.bfloat16)
        self.decoder_b = jax.random.uniform(
            keys[2], (1, ntoken), jnp.float32, -stdv, stdv)

    def init_hidden(self, bsz):
        z = jnp.zeros((self.nlayers, bsz, self.nhid), jnp.float32)
        return (z, z)

    def forward(self, tokens, hidden):
        """tokens: (T, B) int32; hidden: (h, c) each (nlayers, B, H) f32."""
        h0, c0 = hidden
        # Embedding lookup (glue).  Dropout + QLayer/NQLayer quant wrappers are
        # identity in eval / float semantics.
        # TODO(synk): fuse the embedding gather into the layer-0 LSTM kernel via
        # scalar-prefetch row gather to avoid the (T, B, ninp) HBM round trip.
        emb = jnp.take(self.encoder_w, tokens, axis=0).astype(jnp.bfloat16)

        x = emb
        h_out, c_out = [], []
        for l in range(self.nlayers):
            wih, whh, b = self.lstm_params[l]
            x, hT, cT = lstm_layer(x, h0[l], c0[l], wih, whh, b)
            h_out.append(hT)
            c_out.append(cT)
        hidden_out = (jnp.stack(h_out, axis=0), jnp.stack(c_out, axis=0))

        T, B, H = x.shape
        # lp.nn.F.sub_max_rnn (per-row max pre-shift for quant) is omitted:
        # log_softmax is invariant to per-row max subtraction, outputs identical.
        log_probs = decoder_log_softmax(x.reshape(T * B, H),
                                        self.decoder_w, self.decoder_b)
        return log_probs, hidden_out


if __name__ == "__main__":
    # Small but sublane/lane-dense configuration (multiples of 8/16 and 128) so
    # stores are unmasked and MXU tiles are well filled.
    ntoken, ninp, nhid, nlayers = 512, 128, 128, 2
    seq_len, batch = 12, 16

    key = jax.random.PRNGKey(0)
    k_model, k_tokens = jax.random.split(key)

    model = RNNModelPallas("LSTM", ntoken, ninp, nhid, nlayers, k_model)
    tokens = jax.random.randint(k_tokens, (seq_len, batch), 0, ntoken, jnp.int32)
    hidden = model.init_hidden(batch)

    log_probs, hidden_out = model.forward(tokens, hidden)
    jax.block_until_ready((log_probs, hidden_out))

    assert log_probs.shape == (seq_len * batch, ntoken)
    assert log_probs.dtype == jnp.float32
    assert hidden_out[0].shape == (nlayers, batch, nhid)
    assert hidden_out[1].shape == (nlayers, batch, nhid)
    # log_softmax rows must sum to ~1 in probability space.
    assert bool(jnp.all(jnp.abs(jnp.sum(jnp.exp(log_probs), axis=-1) - 1.0) < 1e-4))
    assert bool(jnp.all(jnp.isfinite(log_probs)))

    print("KERNEL_OK")
</pallas_src>

<mosaic_0001>
module attributes {stable_mosaic.version = 11 : i64} {
  func.func @_lstm_layer_kernel(%arg0: i32, %arg1: memref<12x16x128xbf16, #tpu.memory_space<vmem>>, %arg2: memref<16x128xf32, #tpu.memory_space<vmem>>, %arg3: memref<16x128xf32, #tpu.memory_space<vmem>>, %arg4: memref<128x512xbf16, #tpu.memory_space<vmem>>, %arg5: memref<128x512xbf16, #tpu.memory_space<vmem>>, %arg6: memref<1x512xf32, #tpu.memory_space<vmem>>, %arg7: memref<12x16x128xbf16, #tpu.memory_space<vmem>>, %arg8: memref<16x128xf32, #tpu.memory_space<vmem>>, %arg9: memref<16x128xf32, #tpu.memory_space<vmem>>, %arg10: memref<12x16x512xf32, #tpu.memory_space<vmem>>, %arg11: memref<16x128xf32, #tpu.memory_space<vmem>>, %arg12: memref<16x128xf32, #tpu.memory_space<vmem>>) attributes {dimension_semantics = [#tpu.dimension_semantics<arbitrary>], iteration_bounds = array<i64: 1>, scalar_prefetch = 0 : i64, scratch_operands = 3 : i64, tpu.core_type = #tpu.core_type<tc>, window_params = [{transform_indices = @transform_0, window_bounds = array<i64: 12, 16, 128>}, {pipeline_mode = #tpu.pipeline_mode<synchronous>, transform_indices = @transform_1, window_bounds = array<i64: 16, 128>}, {pipeline_mode = #tpu.pipeline_mode<synchronous>, transform_indices = @transform_2, window_bounds = array<i64: 16, 128>}, {pipeline_mode = #tpu.pipeline_mode<synchronous>, transform_indices = @transform_3, window_bounds = array<i64: 128, 512>}, {pipeline_mode = #tpu.pipeline_mode<synchronous>, transform_indices = @transform_4, window_bounds = array<i64: 128, 512>}, {pipeline_mode = #tpu.pipeline_mode<synchronous>, transform_indices = @transform_5, window_bounds = array<i64: 1, 512>}, {transform_indices = @transform_6, window_bounds = array<i64: 12, 16, 128>}, {pipeline_mode = #tpu.pipeline_mode<synchronous>, transform_indices = @transform_7, window_bounds = array<i64: 16, 128>}, {pipeline_mode = #tpu.pipeline_mode<synchronous>, transform_indices = @transform_8, window_bounds = array<i64: 16, 128>}]} {
    %c0_i32 = arith.constant 0 : i32
    %0 = arith.cmpi eq, %arg0, %c0_i32 : i32
    %1 = arith.extui %0 : i1 to i32
    %c0_i32_0 = arith.constant 0 : i32
    %2 = arith.cmpi ne, %1, %c0_i32_0 : i32
    scf.if %2 {
      %c0_20 = arith.constant 0 : index
      %c0_21 = arith.constant 0 : index
      %18 = vector.load %arg2[%c0_20, %c0_21] : memref<16x128xf32, #tpu.memory_space<vmem>>, vector<16x128xf32>
      %c0_22 = arith.constant 0 : index
      %c0_23 = arith.constant 0 : index
      %19 = vector.load %arg11[%c0_22, %c0_23] : memref<16x128xf32, #tpu.memory_space<vmem>>, vector<16x128xf32>
      tpu.vector_store %arg11[%c0_22, %c0_23], %18 {strides = array<i32>} : memref<16x128xf32, #tpu.memory_space<vmem>>, vector<16x128xf32>,
      %c0_24 = arith.constant 0 : index
      %c0_25 = arith.constant 0 : index
      %20 = vector.load %arg3[%c0_24, %c0_25] : memref<16x128xf32, #tpu.memory_space<vmem>>, vector<16x128xf32>
      %c0_26 = arith.constant 0 : index
      %c0_27 = arith.constant 0 : index
      %21 = vector.load %arg12[%c0_26, %c0_27] : memref<16x128xf32, #tpu.memory_space<vmem>>, vector<16x128xf32>
      tpu.vector_store %arg12[%c0_26, %c0_27], %20 {strides = array<i32>} : memref<16x128xf32, #tpu.memory_space<vmem>>, vector<16x128xf32>,
    } else {
    }
    %c0 = arith.constant 0 : index
    %c0_1 = arith.constant 0 : index
    %c0_2 = arith.constant 0 : index
    %3 = vector.load %arg1[%c0, %c0_1, %c0_2] : memref<12x16x128xbf16, #tpu.memory_space<vmem>>, vector<12x16x128xbf16>
    %4 = vector.shape_cast %3 : vector<12x16x128xbf16> to vector<192x128xbf16>
    %c0_3 = arith.constant 0 : index
    %c0_4 = arith.constant 0 : index
    %5 = vector.load %arg4[%c0_3, %c0_4] : memref<128x512xbf16, #tpu.memory_space<vmem>>, vector<128x512xbf16>
    %cst = arith.constant dense<0.000000e+00> : vector<192x512xf32>
    %6 = tpu.matmul %4, %5, %cst {dimension_numbers = #tpu.dot_dimension_numbers<[1], [0], [0], [1], [0, 0, 1, 1], [], []>} : vector<192x128xbf16>, vector<128x512xbf16>, vector<192x512xf32> -> vector<192x512xf32>
    %7 = vector.shape_cast %6 : vector<192x512xf32> to vector<12x16x512xf32>
    %c0_5 = arith.constant 0 : index
    %c0_6 = arith.constant 0 : index
    %c0_7 = arith.constant 0 : index
    %8 = vector.load %arg10[%c0_5, %c0_6, %c0_7] : memref<12x16x512xf32, #tpu.memory_space<vmem>>, vector<12x16x512xf32>
    tpu.vector_store %arg10[%c0_5, %c0_6, %c0_7], %7 {strides = array<i32>} : memref<12x16x512xf32, #tpu.memory_space<vmem>>, vector<12x16x512xf32>,
    %c12_i32 = arith.constant 12 : i32
    %9 = arith.muli %arg0, %c12_i32 : i32
    %c12_i32_8 = arith.constant 12 : i32
    %10 = arith.subi %c12_i32_8, %9 : i32
    %c12_i32_9 = arith.constant 12 : i32
    %11 = arith.minsi %c12_i32_9, %10 : i32
    %c0_i32_10 = arith.constant 0 : i32
    %c0_i32_11 = arith.constant 0 : i32
    %12 = arith.subi %11, %c0_i32_11 : i32
    %13 = arith.addi %c0_i32_11, %12 : i32
    %c1_i32 = arith.constant 1 : i32
    scf.for %arg13 = %c0_i32_11 to %13 step %c1_i32  : i32 {
      %c0_20 = arith.constant 0 : index
      %c0_21 = arith.constant 0 : index
      %18 = vector.load %arg11[%c0_20, %c0_21] : memref<16x128xf32, #tpu.memory_space<vmem>>, vector<16x128xf32>
      %c0_22 = arith.constant 0 : index
      %c0_23 = arith.constant 0 : index
      %19 = vector.load %arg12[%c0_22, %c0_23] : memref<16x128xf32, #tpu.memory_space<vmem>>, vector<16x128xf32>
      %20 = arith.index_cast %arg13 : i32 to index
      %c0_24 = arith.constant 0 : index
      %c0_25 = arith.constant 0 : index
      %21 = vector.load %arg10[%20, %c0_24, %c0_25] : memref<12x16x512xf32, #tpu.memory_space<vmem>>, vector<1x16x512xf32>
      %22 = vector.shape_cast %21 : vector<1x16x512xf32> to vector<16x512xf32>
      %23 = arith.truncf %18 : vector<16x128xf32> to vector<16x128xbf16>
      %c0_26 = arith.constant 0 : index
      %c0_27 = arith.constant 0 : index
      %24 = vector.load %arg5[%c0_26, %c0_27] : memref<128x512xbf16, #tpu.memory_space<vmem>>, vector<128x512xbf16>
      %cst_28 = arith.constant dense<0.000000e+00> : vector<16x512xf32>
      %25 = tpu.matmul %23, %24, %cst_28 {dimension_numbers = #tpu.dot_dimension_numbers<[1], [0], [0], [1], [0, 0, 1, 1], [], []>} : vector<16x128xbf16>, vector<128x512xbf16>, vector<16x512xf32> -> vector<16x512xf32>
      %26 = arith.addf %22, %25 : vector<16x512xf32>
      %c0_29 = arith.constant 0 : index
      %c0_30 = arith.constant 0 : index
      %27 = vector.load %arg6[%c0_29, %c0_30] : memref<1x512xf32, #tpu.memory_space<vmem>>, vector<1x512xf32>
      %28 = vector.broadcast %27 : vector<1x512xf32> to vector<16x512xf32>
      %29 = arith.addf %26, %28 : vector<16x512xf32>
      %30 = vector.extract_strided_slice %29 {offsets = [0, 0], sizes = [16, 128], strides = [1, 1]} : vector<16x512xf32> to vector<16x128xf32>
      %31 = arith.negf %30 : vector<16x128xf32>
      %32 = math.exp %31 : vector<16x128xf32>
      %cst_31 = arith.constant 1.000000e+00 : f32
      %33 = vector.broadcast %cst_31 : f32 to vector<16x128xf32>
      %34 = arith.addf %33, %32 : vector<16x128xf32>
      %35 = arith.divf %33, %34 : vector<16x128xf32>
      %36 = vector.extract_strided_slice %29 {offsets = [0, 128], sizes = [16, 128], strides = [1, 1]} : vector<16x512xf32> to vector<16x128xf32>
      %37 = arith.negf %36 : vector<16x128xf32>
      %38 = math.exp %37 : vector<16x128xf32>
      %cst_32 = arith.constant 1.000000e+00 : f32
      %39 = vector.broadcast %cst_32 : f32 to vector<16x128xf32>
      %40 = arith.addf %39, %38 : vector<16x128xf32>
      %41 = arith.divf %39, %40 : vector<16x128xf32>
      %42 = vector.extract_strided_slice %29 {offsets = [0, 256], sizes = [16, 128], strides = [1, 1]} : vector<16x512xf32> to vector<16x128xf32>
      %43 = math.tanh %42 : vector<16x128xf32>
      %44 = vector.extract_strided_slice %29 {offsets = [0, 384], sizes = [16, 128], strides = [1, 1]} : vector<16x512xf32> to vector<16x128xf32>
      %45 = arith.negf %44 : vector<16x128xf32>
      %46 = math.exp %45 : vector<16x128xf32>
      %cst_33 = arith.constant 1.000000e+00 : f32
      %47 = vector.broadcast %cst_33 : f32 to vector<16x128xf32>
      %48 = arith.addf %47, %46 : vector<16x128xf32>
      %49 = arith.divf %47, %48 : vector<16x128xf32>
      %50 = arith.mulf %41, %19 : vector<16x128xf32>
      %51 = arith.mulf %35, %43 : vector<16x128xf32>
      %52 = arith.addf %50, %51 : vector<16x128xf32>
      %53 = math.tanh %52 : vector<16x128xf32>
      %54 = arith.mulf %49, %53 : vector<16x128xf32>
      %c0_34 = arith.constant 0 : index
      %c0_35 = arith.constant 0 : index
      %55 = vector.load %arg11[%c0_34, %c0_35] : memref<16x128xf32, #tpu.memory_space<vmem>>, vector<16x128xf32>
      tpu.vector_store %arg11[%c0_34, %c0_35], %54 {strides = array<i32>} : memref<16x128xf32, #tpu.memory_space<vmem>>, vector<16x128xf32>,
      %c0_36 = arith.constant 0 : index
      %c0_37 = arith.constant 0 : index
      %56 = vector.load %arg12[%c0_36, %c0_37] : memref<16x128xf32, #tpu.memory_space<vmem>>, vector<16x128xf32>
      tpu.vector_store %arg12[%c0_36, %c0_37], %52 {strides = array<i32>} : memref<16x128xf32, #tpu.memory_space<vmem>>, vector<16x128xf32>,
      %57 = arith.truncf %54 : vector<16x128xf32> to vector<16x128xbf16>
      %58 = arith.index_cast %arg13 : i32 to index
      %c0_38 = arith.constant 0 : index
      %c0_39 = arith.constant 0 : index
      %59 = vector.load %arg7[%58, %c0_38, %c0_39] : memref<12x16x128xbf16, #tpu.memory_space<vmem>>, vector<1x16x128xbf16>
      %60 = vector.shape_cast %59 : vector<1x16x128xbf16> to vector<16x128xbf16>
      %61 = vector.shape_cast %57 : vector<16x128xbf16> to vector<1x16x128xbf16>
      tpu.vector_store %arg7[%58, %c0_38, %c0_39], %61 {strides = array<i32>} : memref<12x16x128xbf16, #tpu.memory_space<vmem>>, vector<1x16x128xbf16>,
    }
    %c0_12 = arith.constant 0 : index
    %c0_13 = arith.constant 0 : index
    %14 = vector.load %arg11[%c0_12, %c0_13] : memref<16x128xf32, #tpu.memory_space<vmem>>, vector<16x128xf32>
    %c0_14 = arith.constant 0 : index
    %c0_15 = arith.constant 0 : index
    %15 = vector.load %arg8[%c0_14, %c0_15] : memref<16x128xf32, #tpu.memory_space<vmem>>, vector<16x128xf32>
    tpu.vector_store %arg8[%c0_14, %c0_15], %14 {strides = array<i32>} : memref<16x128xf32, #tpu.memory_space<vmem>>, vector<16x128xf32>,
    %c0_16 = arith.constant 0 : index
    %c0_17 = arith.constant 0 : index
    %16 = vector.load %arg12[%c0_16, %c0_17] : memref<16x128xf32, #tpu.memory_space<vmem>>, vector<16x128xf32>
    %c0_18 = arith.constant 0 : index
    %c0_19 = arith.constant 0 : index
    %17 = vector.load %arg9[%c0_18, %c0_19] : memref<16x128xf32, #tpu.memory_space<vmem>>, vector<16x128xf32>
    tpu.vector_store %arg9[%c0_18, %c0_19], %16 {strides = array<i32>} : memref<16x128xf32, #tpu.memory_space<vmem>>, vector<16x128xf32>,
    return
  }
  func.func @transform_0(%arg0: i32) -> (i32, i32, i32) {
    %c0_i32 = arith.constant 0 : i32
    %c0_i32_0 = arith.constant 0 : i32
    %c0_i32_1 = arith.constant 0 : i32
    return %arg0, %c0_i32, %c0_i32_0 : i32, i32, i32
  }
  func.func @transform_1(%arg0: i32) -> (i32, i32) {
    %c0_i32 = arith.constant 0 : i32
    %c0_i32_0 = arith.constant 0 : i32
    %c0_i32_1 = arith.constant 0 : i32
    return %c0_i32, %c0_i32_0 : i32, i32
  }
  func.func @transform_2(%arg0: i32) -> (i32, i32) {
    %c0_i32 = arith.constant 0 : i32
    %c0_i32_0 = arith.constant 0 : i32
    %c0_i32_1 = arith.constant 0 : i32
    return %c0_i32, %c0_i32_0 : i32, i32
  }
  func.func @transform_3(%arg0: i32) -> (i32, i32) {
    %c0_i32 = arith.constant 0 : i32
    %c0_i32_0 = arith.constant 0 : i32
    %c0_i32_1 = arith.constant 0 : i32
    return %c0_i32, %c0_i32_0 : i32, i32
  }
  func.func @transform_4(%arg0: i32) -> (i32, i32) {
    %c0_i32 = arith.constant 0 : i32
    %c0_i32_0 = arith.constant 0 : i32
    %c0_i32_1 = arith.constant 0 : i32
    return %c0_i32, %c0_i32_0 : i32, i32
  }
  func.func @transform_5(%arg0: i32) -> (i32, i32) {
    %c0_i32 = arith.constant 0 : i32
    %c0_i32_0 = arith.constant 0 : i32
    %c0_i32_1 = arith.constant 0 : i32
    return %c0_i32, %c0_i32_0 : i32, i32
  }
  func.func @transform_6(%arg0: i32) -> (i32, i32, i32) {
    %c0_i32 = arith.constant 0 : i32
    %c0_i32_0 = arith.constant 0 : i32
    %c0_i32_1 = arith.constant 0 : i32
    return %arg0, %c0_i32, %c0_i32_0 : i32, i32, i32
  }
  func.func @transform_7(%arg0: i32) -> (i32, i32) {
    %c0_i32 = arith.constant 0 : i32
    %c0_i32_0 = arith.constant 0 : i32
    %c0_i32_1 = arith.constant 0 : i32
    return %c0_i32, %c0_i32_0 : i32, i32
  }
  func.func @transform_8(%arg0: i32) -> (i32, i32) {
    %c0_i32 = arith.constant 0 : i32
    %c0_i32_0 = arith.constant 0 : i32
    %c0_i32_1 = arith.constant 0 : i32
    return %c0_i32, %c0_i32_0 : i32, i32
  }
}

</mosaic_0001>

<llo_original>
// kernel: tpu_custom_call.1
$region0: #{tpu_custom_call.1}
  #allocation0 [shape = 'u32[]', space=smem, size = 0x4, offset = 0x4, fixed_abs, tag = 'smem constant byte address 0x4 - core index']
  #allocation1 [shape = 'u32[144,128]{1,0:T(1,128)}', space=vmem, size = 0x12000, scoped, tag = 'internal scratch']
  #allocation2 [shape = 'f32[12,16,512]{2,1,0:T(8,128)}', space=vmem, size = 0x60000, scoped, tag = 'scratch operand']
  #allocation3 [shape = 'f32[16,128]{1,0:T(8,128)}', space=vmem, size = 0x2000, scoped, tag = 'scratch operand']
  #allocation4 [shape = 'f32[16,128]{1,0:T(8,128)}', space=vmem, size = 0x2000, scoped, tag = 'scratch operand']
  %s0 = inlined_call_operand.hbm [shape: bf16[12,16,128], index: 0, kind: input, shape index: {}]
  %s1 = inlined_call_operand.hbm [shape: f32[16,128], index: 1, kind: input, shape index: {}]
  %s2 = inlined_call_operand.hbm [shape: f32[16,128], index: 2, kind: input, shape index: {}]
  %s3 = inlined_call_operand.hbm [shape: bf16[128,512], index: 3, kind: input, shape index: {}]
  %s4 = inlined_call_operand.hbm [shape: bf16[128,512], index: 4, kind: input, shape index: {}]
  %s5 = inlined_call_operand.vmem [shape: f32[1,512], index: 5, kind: input, shape index: {}]
  %s6 = inlined_call_operand.hbm [shape: bf16[12,16,128], index: 6, kind: output, shape index: {0}]
  %s7 = inlined_call_operand.hbm [shape: f32[16,128], index: 7, kind: output, shape index: {1}]
  %s8 = inlined_call_operand.hbm [shape: f32[16,128], index: 8, kind: output, shape index: {2}]
  %9 = xla_tuple %s6, %s7, %s8
  %s10 = sld [smem:[#allocation0]]
  $region81: #{tpu_custom_call.1} parent=0
    _
  %s12 = ssub.s32 1, %s10
  %s13 = scalar_select 0, %s12, %s10
  $region1: #{tpu_custom_call.1} parent=0
    #allocation5 [shape = 'u8[49152]{0}', space=vmem, size = 0xc000, scoped, tag = 'input window, operand 0, single buffered']
    #allocation6 [shape = 's32[1]{0}', space=sflag, size = 0x4, scoped, tag = 'scoped memory for tpu_custom_call.1']
    #allocation7 [shape = 's32[1]{0}', space=sflag, size = 0x4, scoped, tag = 'scoped memory for tpu_custom_call.1']
    #allocation8 [shape = 'u8[8192]{0}', space=vmem, size = 0x2000, scoped, tag = 'input window, operand 1, single buffered']
    #allocation9 [shape = 's32[1]{0}', space=sflag, size = 0x4, scoped, tag = 'scoped memory for tpu_custom_call.1']
    #allocation10 [shape = 'u8[8192]{0}', space=vmem, size = 0x2000, scoped, tag = 'input window, operand 2, single buffered']
    #allocation11 [shape = 'u8[131072]{0}', space=vmem, size = 0x20000, scoped, tag = 'input window, operand 3, single buffered']
    #allocation12 [shape = 's32[1]{0}', space=sflag, size = 0x4, scoped, tag = 'scoped memory for tpu_custom_call.1']
    #allocation13 [shape = 'u8[131072]{0}', space=vmem, size = 0x20000, scoped, tag = 'input window, operand 4, single buffered']
    #allocation14 [shape = 'u8[49152]{0}', space=vmem, size = 0xc000, scoped, tag = 'output window, operand 0, single buffered']
    #allocation15 [shape = 'u8[8192]{0}', space=vmem, size = 0x2000, scoped, tag = 'output window, operand 1, single buffered']
    #allocation16 [shape = 's32[1]{0}', space=sflag, size = 0x4, scoped, tag = 'scoped memory for tpu_custom_call.1']
    #allocation17 [shape = 'u8[8192]{0}', space=vmem, size = 0x2000, scoped, tag = 'output window, operand 2, single buffered']
    %14 = vsyncpa [#allocation6], 0
    %15 = vsyncpa [#allocation9], 0
    %16 = vsyncpa [#allocation12], 0
    %17 = vsyncpa [#allocation7], 0
    %18 = vsyncpa [#allocation16], 0
    // Predicated region
    $region2: #{tpu_custom_call.1} parent=1 // pred_check
      _
    $region3: #{tpu_custom_call.1} parent=1 // pred_check_branch
      %20 = sbr.rel (0) target = $region5
    $region4: #{tpu_custom_call.1} parent=1 // pred_region
      %s22 = ssub.s32 1536, 1536
      %23 = vsyncadd [#allocation6], %s22
      %s24 = sshll.u32 [#allocation5], 4
      %s25 = int_to_ptr.vmem [resolvable:$true] %s24
      %30 = dma.hbm_to_vmem [thread:$0]  %s0, 1536, %s25, [#allocation6], 64, 64, 4
    $region5: #{tpu_custom_call.1} parent=1 // pred_fallthru
      _
    // Predicated region
    $region6: #{tpu_custom_call.1} parent=1 // pred_check
      _
    $region7: #{tpu_custom_call.1} parent=1 // pred_check_branch
      %32 = sbr.rel (0) target = $region9
    $region8: #{tpu_custom_call.1} parent=1 // pred_region
      %s34 = ssub.s32 256, 256
      %35 = vsyncadd [#allocation9], %s34
      %s36 = sshll.u32 [#allocation8], 4
      %s37 = int_to_ptr.vmem [resolvable:$true] %s36
      %42 = dma.hbm_to_vmem [thread:$0]  %s1, 256, %s37, [#allocation9], 128, 128, 8
    $region9: #{tpu_custom_call.1} parent=1 // pred_fallthru
      _
    // Predicated region
    $region10: #{tpu_custom_call.1} parent=1 // pred_check
      _
    $region11: #{tpu_custom_call.1} parent=1 // pred_check_branch
      %44 = sbr.rel (0) target = $region13
    $region12: #{tpu_custom_call.1} parent=1 // pred_region
      %s46 = ssub.s32 256, 256
      %47 = vsyncadd [#allocation9], %s46
      %s48 = sshll.u32 [#allocation10], 4
      %s49 = int_to_ptr.vmem [resolvable:$true] %s48
      %54 = dma.hbm_to_vmem [thread:$0]  %s2, 256, %s49, [#allocation9], 128, 128, 8
    $region13: #{tpu_custom_call.1} parent=1 // pred_fallthru
      _
    // Predicated region
    $region14: #{tpu_custom_call.1} parent=1 // pred_check
      _
    $region15: #{tpu_custom_call.1} parent=1 // pred_check_branch
      %56 = sbr.rel (0) target = $region17
    $region16: #{tpu_custom_call.1} parent=1 // pred_region
      %s58 = ssub.s32 4096, 4096
      %59 = vsyncadd [#allocation12], %s58
      %s60 = sshll.u32 [#allocation11], 4
      %s61 = int_to_ptr.vmem [resolvable:$true] %s60
      %66 = dma.hbm_to_vmem [thread:$0]  %s3, 4096, %s61, [#allocation12], 256, 256, 16
    $region17: #{tpu_custom_call.1} parent=1 // pred_fallthru
      _
    // Predicated region
    $region18: #{tpu_custom_call.1} parent=1 // pred_check
      _
    $region19: #{tpu_custom_call.1} parent=1 // pred_check_branch
      %68 = sbr.rel (0) target = $region21
    $region20: #{tpu_custom_call.1} parent=1 // pred_region
      %s70 = ssub.s32 4096, 4096
      %71 = vsyncadd [#allocation12], %s70
      %s72 = sshll.u32 [#allocation13], 4
      %s73 = int_to_ptr.vmem [resolvable:$true] %s72
      %78 = dma.hbm_to_vmem [thread:$0]  %s4, 4096, %s73, [#allocation12], 256, 256, 16
    $region21: #{tpu_custom_call.1} parent=1 // pred_fallthru
      _
    // Predicated region
    $region22: #{tpu_custom_call.1} parent=1 // pred_check
      _
    $region23: #{tpu_custom_call.1} parent=1 // pred_check_branch
      %80 = sbr.rel (0) target = $region25
    $region24: #{tpu_custom_call.1} parent=1 // pred_region
      _
    $region25: #{tpu_custom_call.1} parent=1 // pred_fallthru
      _
    // Predicated region
    $region26: #{tpu_custom_call.1} parent=1 // pred_check
      _
    $region27: #{tpu_custom_call.1} parent=1 // pred_check_branch
      %82 = sbr.rel (0) target = $region29
    $region28: #{tpu_custom_call.1} parent=1 // pred_region
      %83 = dma.done [#allocation6], 1536
    $region29: #{tpu_custom_call.1} parent=1 // pred_fallthru
      _
    // Predicated region
    $region30: #{tpu_custom_call.1} parent=1 // pred_check
      _
    $region31: #{tpu_custom_call.1} parent=1 // pred_check_branch
      %85 = sbr.rel (0) target = $region33
    $region32: #{tpu_custom_call.1} parent=1 // pred_region
      %86 = dma.done [#allocation9], 256
    $region33: #{tpu_custom_call.1} parent=1 // pred_fallthru
      _
    // Predicated region
    $region34: #{tpu_custom_call.1} parent=1 // pred_check
      _
    $region35: #{tpu_custom_call.1} parent=1 // pred_check_branch
      %88 = sbr.rel (0) target = $region37
    $region36: #{tpu_custom_call.1} parent=1 // pred_region
      %89 = dma.done [#allocation9], 256
    $region37: #{tpu_custom_call.1} parent=1 // pred_fallthru
      _
    // Predicated region
    $region38: #{tpu_custom_call.1} parent=1 // pred_check
      _
    $region39: #{tpu_custom_call.1} parent=1 // pred_check_branch
      %91 = sbr.rel (0) target = $region41
    $region40: #{tpu_custom_call.1} parent=1 // pred_region
      %92 = dma.done [#allocation12], 4096
    $region41: #{tpu_custom_call.1} parent=1 // pred_fallthru
      _
    // Predicated region
    $region42: #{tpu_custom_call.1} parent=1 // pred_check
      _
    $region43: #{tpu_custom_call.1} parent=1 // pred_check_branch
      %94 = sbr.rel (0) target = $region45
    $region44: #{tpu_custom_call.1} parent=1 // pred_region
      %95 = dma.done [#allocation12], 4096
    $region45: #{tpu_custom_call.1} parent=1 // pred_fallthru
      _
    %p97 = scmp.eq.s32.totalorder 0, 0
    // Predicated region
    $region46: #{tpu_custom_call.1} parent=1 // pred_check
      %p98 = pneg %p97
    $region47: #{tpu_custom_call.1} parent=1 // pred_check_branch
      %100 = sbr.rel (%p98) target = $region49
    $region48: #{tpu_custom_call.1} parent=1 // pred_region
      %v101 = vld [vmem:[#allocation8] sm:$0xff]
      %v102 = vld [vmem:[#allocation8 + $0x8] sm:$0xff]
      %103 = vst [vmem:[#allocation3] sm:$0xff] %v101
      %104 = vst [vmem:[#allocation3 + $0x8] sm:$0xff] %v102
      %v105 = vld [vmem:[#allocation10] sm:$0xff]
      %v106 = vld [vmem:[#allocation10 + $0x8] sm:$0xff]
      %107 = vst [vmem:[#allocation4] sm:$0xff] %v105
      %108 = vst [vmem:[#allocation4 + $0x8] sm:$0xff] %v106
    $region49: #{tpu_custom_call.1} parent=1 // pred_fallthru
      _
    %v109 = vld [vmem:[#allocation5] sm:$0xf]
    %v110 = vld [vmem:[#allocation5 + $0x4] sm:$0xf]
    %v111 = vld [vmem:[#allocation5 + $0x8] sm:$0xf]
    %v112 = vld [vmem:[#allocation5 + $0xc] sm:$0xf]
    %v113 = vld [vmem:[#allocation5 + $0x10] sm:$0xf]
    %v114 = vld [vmem:[#allocation5 + $0x14] sm:$0xf]
    %v115 = vld [vmem:[#allocation5 + $0x18] sm:$0xf]
    %v116 = vld [vmem:[#allocation5 + $0x1c] sm:$0xf]
    %v117 = vld [vmem:[#allocation5 + $0x20] sm:$0xf]
    %v118 = vld [vmem:[#allocation5 + $0x24] sm:$0xf]
    %v119 = vld [vmem:[#allocation5 + $0x28] sm:$0xf]
    %v120 = vld [vmem:[#allocation5 + $0x2c] sm:$0xf]
    %v121 = vld [vmem:[#allocation5 + $0x30] sm:$0xf]
    %v122 = vld [vmem:[#allocation5 + $0x34] sm:$0xf]
    %v123 = vld [vmem:[#allocation5 + $0x38] sm:$0xf]
    %v124 = vld [vmem:[#allocation5 + $0x3c] sm:$0xf]
    %v125 = vld [vmem:[#allocation5 + $0x40] sm:$0xf]
    %v126 = vld [vmem:[#allocation5 + $0x44] sm:$0xf]
    %v127 = vld [vmem:[#allocation5 + $0x48] sm:$0xf]
    %v128 = vld [vmem:[#allocation5 + $0x4c] sm:$0xf]
    %v129 = vld [vmem:[#allocation5 + $0x50] sm:$0xf]
    %v130 = vld [vmem:[#allocation5 + $0x54] sm:$0xf]
    %v131 = vld [vmem:[#allocation5 + $0x58] sm:$0xf]
    %v132 = vld [vmem:[#allocation5 + $0x5c] sm:$0xf]
    %v133 = vld [vmem:[#allocation11] sm:$0xff]
    %v134 = vld [vmem:[#allocation11 + $0x8] sm:$0xff]
    %v135 = vld [vmem:[#allocation11 + $0x10] sm:$0xff]
    %v136 = vld [vmem:[#allocation11 + $0x18] sm:$0xff]
    %v137 = vld [vmem:[#allocation11 + $0x20] sm:$0xff]
    %v138 = vld [vmem:[#allocation11 + $0x28] sm:$0xff]
    %v139 = vld [vmem:[#allocation11 + $0x30] sm:$0xff]
    %v140 = vld [vmem:[#allocation11 + $0x38] sm:$0xff]
    %v141 = vld [vmem:[#allocation11 + $0x40] sm:$0xff]
    %v142 = vld [vmem:[#allocation11 + $0x48] sm:$0xff]
    %v143 = vld [vmem:[#allocation11 + $0x50] sm:$0xff]
    %v144 = vld [vmem:[#allocation11 + $0x58] sm:$0xff]
    %v145 = vld [vmem:[#allocation11 + $0x60] sm:$0xff]
    %v146 = vld [vmem:[#allocation11 + $0x68] sm:$0xff]
    %v147 = vld [vmem:[#allocation11 + $0x70] sm:$0xff]
    %v148 = vld [vmem:[#allocation11 + $0x78] sm:$0xff]
    %v149 = vld [vmem:[#allocation11 + $0x80] sm:$0xff]
    %v150 = vld [vmem:[#allocation11 + $0x88] sm:$0xff]
    %v151 = vld [vmem:[#allocation11 + $0x90] sm:$0xff]
    %v152 = vld [vmem:[#allocation11 + $0x98] sm:$0xff]
    %v153 = vld [vmem:[#allocation11 + $0xa0] sm:$0xff]
    %v154 = vld [vmem:[#allocation11 + $0xa8] sm:$0xff]
    %v155 = vld [vmem:[#allocation11 + $0xb0] sm:$0xff]
    %v156 = vld [vmem:[#allocation11 + $0xb8] sm:$0xff]
    %v157 = vld [vmem:[#allocation11 + $0xc0] sm:$0xff]
    %v158 = vld [vmem:[#allocation11 + $0xc8] sm:$0xff]
    %v159 = vld [vmem:[#allocation11 + $0xd0] sm:$0xff]
    %v160 = vld [vmem:[#allocation11 + $0xd8] sm:$0xff]
    %v161 = vld [vmem:[#allocation11 + $0xe0] sm:$0xff]
    %v162 = vld [vmem:[#allocation11 + $0xe8] sm:$0xff]
    %v163 = vld [vmem:[#allocation11 + $0xf0] sm:$0xff]
    %v164 = vld [vmem:[#allocation11 + $0xf8] sm:$0xff]
    %v189 = vunpack.c.l.b16 %v109
    %v190 = vunpack.c.l.b16 %v110
    %v191 = vunpack.c.l.b16 %v111
    %v192 = vunpack.c.l.b16 %v112
    %v193 = vunpack.c.l.b16 %v113
    %v194 = vunpack.c.l.b16 %v114
    %v195 = vunpack.c.l.b16 %v115
    %v196 = vunpack.c.l.b16 %v116
    %v197 = vunpack.c.l.b16 %v117
    %v198 = vunpack.c.l.b16 %v118
    %v199 = vunpack.c.l.b16 %v119
    %v200 = vunpack.c.l.b16 %v120
    %v201 = vunpack.c.l.b16 %v121
    %v202 = vunpack.c.l.b16 %v122
    %v203 = vunpack.c.l.b16 %v123
    %v204 = vunpack.c.l.b16 %v124
    %v205 = vunpack.c.l.b16 %v125
    %v206 = vunpack.c.l.b16 %v126
    %v207 = vunpack.c.l.b16 %v127
    %v208 = vunpack.c.l.b16 %v128
    %v209 = vunpack.c.l.b16 %v129
    %v210 = vunpack.c.l.b16 %v130
    %v211 = vunpack.c.l.b16 %v131
    %v212 = vunpack.c.l.b16 %v132
    %v213 = vpack.c.b16 %v190, %v189
    %v214 = vpack.c.b16 %v192, %v191
    %v215 = vpack.c.b16 %v194, %v193
    %v216 = vpack.c.b16 %v196, %v195
    %v217 = vpack.c.b16 %v198, %v197
    %v218 = vpack.c.b16 %v200, %v199
    %v219 = vpack.c.b16 %v202, %v201
    %v220 = vpack.c.b16 %v204, %v203
    %v221 = vpack.c.b16 %v206, %v205
    %v222 = vpack.c.b16 %v208, %v207
    %v223 = vpack.c.b16 %v210, %v209
    %v224 = vpack.c.b16 %v212, %v211
    %v269 = vunpack.c.l.b16 %v133
    %v270 = vunpack.c.h.b16 %v133
    %v271 = vunpack.c.l.b16 %v134
    %v272 = vunpack.c.h.b16 %v134
    %v273 = vunpack.c.l.b16 %v135
    %v274 = vunpack.c.h.b16 %v135
    %v275 = vunpack.c.l.b16 %v136
    %v276 = vunpack.c.h.b16 %v136
    %v277 = vunpack.c.l.b16 %v137
    %v278 = vunpack.c.h.b16 %v137
    %v279 = vunpack.c.l.b16 %v138
    %v280 = vunpack.c.h.b16 %v138
    %v281 = vunpack.c.l.b16 %v139
    %v282 = vunpack.c.h.b16 %v139
    %v283 = vunpack.c.l.b16 %v140
    %v284 = vunpack.c.h.b16 %v140
    %v285 = vunpack.c.l.b16 %v141
    %v286 = vunpack.c.h.b16 %v141
    %v287 = vunpack.c.l.b16 %v142
    %v288 = vunpack.c.h.b16 %v142
    %v289 = vunpack.c.l.b16 %v143
    %v290 = vunpack.c.h.b16 %v143
    %v291 = vunpack.c.l.b16 %v144
    %v292 = vunpack.c.h.b16 %v144
    %v293 = vunpack.c.l.b16 %v145
    %v294 = vunpack.c.h.b16 %v145
    %v295 = vunpack.c.l.b16 %v146
    %v296 = vunpack.c.h.b16 %v146
    %v297 = vunpack.c.l.b16 %v147
    %v298 = vunpack.c.h.b16 %v147
    %v299 = vunpack.c.l.b16 %v148
    %v300 = vunpack.c.h.b16 %v148
    %v301 = vunpack.c.l.b16 %v149
    %v302 = vunpack.c.h.b16 %v149
    %v303 = vunpack.c.l.b16 %v150
    %v304 = vunpack.c.h.b16 %v150
    %v305 = vunpack.c.l.b16 %v151
    %v306 = vunpack.c.h.b16 %v151
    %v307 = vunpack.c.l.b16 %v152
    %v308 = vunpack.c.h.b16 %v152
    %v309 = vunpack.c.l.b16 %v153
    %v310 = vunpack.c.h.b16 %v153
    %v311 = vunpack.c.l.b16 %v154
    %v312 = vunpack.c.h.b16 %v154
    %v313 = vunpack.c.l.b16 %v155
    %v314 = vunpack.c.h.b16 %v155
    %v315 = vunpack.c.l.b16 %v156
    %v316 = vunpack.c.h.b16 %v156
    %v317 = vunpack.c.l.b16 %v157
    %v318 = vunpack.c.h.b16 %v157
    %v319 = vunpack.c.l.b16 %v158
    %v320 = vunpack.c.h.b16 %v158
    %v321 = vunpack.c.l.b16 %v159
    %v322 = vunpack.c.h.b16 %v159
    %v323 = vunpack.c.l.b16 %v160
    %v324 = vunpack.c.h.b16 %v160
    %v325 = vunpack.c.l.b16 %v161
    %v326 = vunpack.c.h.b16 %v161
    %v327 = vunpack.c.l.b16 %v162
    %v328 = vunpack.c.h.b16 %v162
    %v329 = vunpack.c.l.b16 %v163
    %v330 = vunpack.c.h.b16 %v163
    %v331 = vunpack.c.l.b16 %v164
    %v332 = vunpack.c.h.b16 %v164
    %v333 = vpack.c.b16 %v273, %v269
    %v334 = vpack.c.b16 %v274, %v270
    %v335 = vpack.c.b16 %v275, %v271
    %v336 = vpack.c.b16 %v276, %v272
    %v337 = vpack.c.b16 %v281, %v277
    %v338 = vpack.c.b16 %v282, %v278
    %v339 = vpack.c.b16 %v283, %v279
    %v340 = vpack.c.b16 %v284, %v280
    %v341 = vpack.c.b16 %v289, %v285
    %v342 = vpack.c.b16 %v290, %v286
    %v343 = vpack.c.b16 %v291, %v287
    %v344 = vpack.c.b16 %v292, %v288
    %v345 = vpack.c.b16 %v297, %v293
    %v346 = vpack.c.b16 %v298, %v294
    %v347 = vpack.c.b16 %v299, %v295
    %v348 = vpack.c.b16 %v300, %v296
    %v349 = vpack.c.b16 %v305, %v301
    %v350 = vpack.c.b16 %v306, %v302
    %v351 = vpack.c.b16 %v307, %v303
    %v352 = vpack.c.b16 %v308, %v304
    %v353 = vpack.c.b16 %v313, %v309
    %v354 = vpack.c.b16 %v314, %v310
    %v355 = vpack.c.b16 %v315, %v311
    %v356 = vpack.c.b16 %v316, %v312
    %v357 = vpack.c.b16 %v321, %v317
    %v358 = vpack.c.b16 %v322, %v318
    %v359 = vpack.c.b16 %v323, %v319
    %v360 = vpack.c.b16 %v324, %v320
    %v361 = vpack.c.b16 %v329, %v325
    %v362 = vpack.c.b16 %v330, %v326
    %v363 = vpack.c.b16 %v331, %v327
    %v364 = vpack.c.b16 %v332, %v328
    %397 = vmatprep.subr.bf16.mxu0 %v334
    %398 = vmatpush1.bf16.msra.mxu0 %v333
    %399 = vmatprep.subr.bf16.mxu0 %v338
    %400 = vmatpush1.bf16.msra.mxu0 %v337
    %401 = vmatprep.subr.bf16.mxu0 %v342
    %402 = vmatpush1.bf16.msra.mxu0 %v341
    %403 = vmatprep.subr.bf16.mxu0 %v346
    %404 = vmatpush1.bf16.msra.mxu0 %v345
    %405 = vmatprep.subr.bf16.mxu0 %v350
    %406 = vmatpush1.bf16.msra.mxu0 %v349
    %407 = vmatprep.subr.bf16.mxu0 %v354
    %408 = vmatpush1.bf16.msra.mxu0 %v353
    %409 = vmatprep.subr.bf16.mxu0 %v358
    %410 = vmatpush1.bf16.msra.mxu0 %v357
    %411 = vmatprep.subr.bf16.mxu0 %v362
    %412 = vmatpush1.bf16.msra.mxu0 %v361
    %413 = vmatprep.subr.bf16.mxu0 0
    %414 = vmatpush1.bf16.msra.mxu0 0
    %415 = vmatprep.subr.bf16.mxu0 0
    %416 = vmatpush1.bf16.msra.mxu0 0
    %417 = vmatprep.subr.bf16.mxu0 0
    %418 = vmatpush1.bf16.msra.mxu0 0
    %419 = vmatprep.subr.bf16.mxu0 0
    %420 = vmatpush1.bf16.msra.mxu0 0
    %421 = vmatprep.subr.bf16.mxu0 0
    %422 = vmatpush1.bf16.msra.mxu0 0
    %423 = vmatprep.subr.bf16.mxu0 0
    %424 = vmatpush1.bf16.msra.mxu0 0
    %425 = vmatprep.subr.bf16.mxu0 0
    %426 = vmatpush1.bf16.msra.mxu0 0
    %427 = vmatprep.subr.bf16.mxu0 0
    %428 = vmatpush1.bf16.msra.mxu0 0
    %429 = vmatprep.mubr.bf16.mxu0 0
    %430 = vmatmul.mubr.bf16.gmra.mrb[0].mxu0 %v213
    %v431 = vpop.f32.mrb[0].mxu0
    %v432 = vadd.f32 0.0, %v431
    %v433 = vpop.f32.mrb[0].mxu0
    %v434 = vadd.f32 0.0, %v433
    %v435 = vpop.f32.mrb[0].mxu0
    %v436 = vadd.f32 0.0, %v435
    %v437 = vpop.f32.mrb[0].mxu0
    %v438 = vadd.f32 0.0, %v437
    %439 = vmatprep.mubr.bf16.mxu0 0
    %440 = vmatmul.mubr.bf16.gmra.mrb[0].mxu0 %v214
    %v441 = vpop.f32.mrb[0].mxu0
    %v442 = vadd.f32 0.0, %v441
    %v443 = vpop.f32.mrb[0].mxu0
    %v444 = vadd.f32 0.0, %v443
    %v445 = vpop.f32.mrb[0].mxu0
    %v446 = vadd.f32 0.0, %v445
    %v447 = vpop.f32.mrb[0].mxu0
    %v448 = vadd.f32 0.0, %v447
    %449 = vmatprep.mubr.bf16.mxu0 0
    %450 = vmatmul.mubr.bf16.gmra.mrb[0].mxu0 %v215
    %v451 = vpop.f32.mrb[0].mxu0
    %v452 = vadd.f32 0.0, %v451
    %v453 = vpop.f32.mrb[0].mxu0
    %v454 = vadd.f32 0.0, %v453
    %v455 = vpop.f32.mrb[0].mxu0
    %v456 = vadd.f32 0.0, %v455
    %v457 = vpop.f32.mrb[0].mxu0
    %v458 = vadd.f32 0.0, %v457
    %459 = vmatprep.mubr.bf16.mxu0 0
    %460 = vmatmul.mubr.bf16.gmra.mrb[0].mxu0 %v216
    %v461 = vpop.f32.mrb[0].mxu0
    %v462 = vadd.f32 0.0, %v461
    %v463 = vpop.f32.mrb[0].mxu0
    %v464 = vadd.f32 0.0, %v463
    %v465 = vpop.f32.mrb[0].mxu0
    %v466 = vadd.f32 0.0, %v465
    %v467 = vpop.f32.mrb[0].mxu0
    %v468 = vadd.f32 0.0, %v467
    %469 = vmatprep.mubr.bf16.mxu0 0
    %470 = vmatmul.mubr.bf16.gmra.mrb[0].mxu0 %v217
    %v471 = vpop.f32.mrb[0].mxu0
    %v472 = vadd.f32 0.0, %v471
    %v473 = vpop.f32.mrb[0].mxu0
    %v474 = vadd.f32 0.0, %v473
    %v475 = vpop.f32.mrb[0].mxu0
    %v476 = vadd.f32 0.0, %v475
    %v477 = vpop.f32.mrb[0].mxu0
    %v478 = vadd.f32 0.0, %v477
    %479 = vmatprep.mubr.bf16.mxu0 0
    %480 = vmatmul.mubr.bf16.gmra.mrb[0].mxu0 %v218
    %v481 = vpop.f32.mrb[0].mxu0
    %v482 = vadd.f32 0.0, %v481
    %v483 = vpop.f32.mrb[0].mxu0
    %v484 = vadd.f32 0.0, %v483
    %v485 = vpop.f32.mrb[0].mxu0
    %v486 = vadd.f32 0.0, %v485
    %v487 = vpop.f32.mrb[0].mxu0
    %v488 = vadd.f32 0.0, %v487
    %489 = vmatprep.mubr.bf16.mxu0 0
    %490 = vmatmul.mubr.bf16.gmra.mrb[0].mxu0 %v219
    %v491 = vpop.f32.mrb[0].mxu0
    %v492 = vadd.f32 0.0, %v491
    %v493 = vpop.f32.mrb[0].mxu0
    %v494 = vadd.f32 0.0, %v493
    %v495 = vpop.f32.mrb[0].mxu0
    %v496 = vadd.f32 0.0, %v495
    %v497 = vpop.f32.mrb[0].mxu0
    %v498 = vadd.f32 0.0, %v497
    %499 = vmatprep.mubr.bf16.mxu0 0
    %500 = vmatmul.mubr.bf16.gmra.mrb[0].mxu0 %v220
    %v501 = vpop.f32.mrb[0].mxu0
    %v502 = vadd.f32 0.0, %v501
    %v503 = vpop.f32.mrb[0].mxu0
    %v504 = vadd.f32 0.0, %v503
    %v505 = vpop.f32.mrb[0].mxu0
    %v506 = vadd.f32 0.0, %v505
    %v507 = vpop.f32.mrb[0].mxu0
    %v508 = vadd.f32 0.0, %v507
    %509 = vmatprep.mubr.bf16.mxu0 0
    %510 = vmatmul.mubr.bf16.gmra.mrb[0].mxu0 %v221
    %v511 = vpop.f32.mrb[0].mxu0
    %v512 = vadd.f32 0.0, %v511
    %v513 = vpop.f32.mrb[0].mxu0
    %v514 = vadd.f32 0.0, %v513
    %v515 = vpop.f32.mrb[0].mxu0
    %v516 = vadd.f32 0.0, %v515
    %v517 = vpop.f32.mrb[0].mxu0
    %v518 = vadd.f32 0.0, %v517
    %519 = vmatprep.mubr.bf16.mxu0 0
    %520 = vmatmul.mubr.bf16.gmra.mrb[0].mxu0 %v222
    %v521 = vpop.f32.mrb[0].mxu0
    %v522 = vadd.f32 0.0, %v521
    %v523 = vpop.f32.mrb[0].mxu0
    %v524 = vadd.f32 0.0, %v523
    %v525 = vpop.f32.mrb[0].mxu0
    %v526 = vadd.f32 0.0, %v525
    %v527 = vpop.f32.mrb[0].mxu0
    %v528 = vadd.f32 0.0, %v527
    %529 = vmatprep.mubr.bf16.mxu0 0
    %530 = vmatmul.mubr.bf16.gmra.mrb[0].mxu0 %v223
    %v531 = vpop.f32.mrb[0].mxu0
    %v532 = vadd.f32 0.0, %v531
    %v533 = vpop.f32.mrb[0].mxu0
    %v534 = vadd.f32 0.0, %v533
    %v535 = vpop.f32.mrb[0].mxu0
    %v536 = vadd.f32 0.0, %v535
    %v537 = vpop.f32.mrb[0].mxu0
    %v538 = vadd.f32 0.0, %v537
    %539 = vmatprep.mubr.bf16.mxu0 0
    %540 = vmatmul.mubr.bf16.gmra.mrb[0].mxu0 %v224
    %v541 = vpop.f32.mrb[0].mxu0
    %v542 = vadd.f32 0.0, %v541
    %v543 = vpop.f32.mrb[0].mxu0
    %v544 = vadd.f32 0.0, %v543
    %v545 = vpop.f32.mrb[0].mxu0
    %v546 = vadd.f32 0.0, %v545
    %v547 = vpop.f32.mrb[0].mxu0
    %v548 = vadd.f32 0.0, %v547
    %549 = vdwg.mxu0
    %550 = vmatprep.subr.bf16.mxu0 %v336
    %551 = vmatpush1.bf16.msra.mxu0 %v335
    %552 = vmatprep.subr.bf16.mxu0 %v340
    %553 = vmatpush1.bf16.msra.mxu0 %v339
    %554 = vmatprep.subr.bf16.mxu0 %v344
    %555 = vmatpush1.bf16.msra.mxu0 %v343
    %556 = vmatprep.subr.bf16.mxu0 %v348
    %557 = vmatpush1.bf16.msra.mxu0 %v347
    %558 = vmatprep.subr.bf16.mxu0 %v352
    %559 = vmatpush1.bf16.msra.mxu0 %v351
    %560 = vmatprep.subr.bf16.mxu0 %v356
    %561 = vmatpush1.bf16.msra.mxu0 %v355
    %562 = vmatprep.subr.bf16.mxu0 %v360
    %563 = vmatpush1.bf16.msra.mxu0 %v359
    %564 = vmatprep.subr.bf16.mxu0 %v364
    %565 = vmatpush1.bf16.msra.mxu0 %v363
    %566 = vmatprep.subr.bf16.mxu0 0
    %567 = vmatpush1.bf16.msra.mxu0 0
    %568 = vmatprep.subr.bf16.mxu0 0
    %569 = vmatpush1.bf16.msra.mxu0 0
    %570 = vmatprep.subr.bf16.mxu0 0
    %571 = vmatpush1.bf16.msra.mxu0 0
    %572 = vmatprep.subr.bf16.mxu0 0
    %573 = vmatpush1.bf16.msra.mxu0 0
    %574 = vmatprep.subr.bf16.mxu0 0
    %575 = vmatpush1.bf16.msra.mxu0 0
    %576 = vmatprep.subr.bf16.mxu0 0
    %577 = vmatpush1.bf16.msra.mxu0 0
    %578 = vmatprep.subr.bf16.mxu0 0
    %579 = vmatpush1.bf16.msra.mxu0 0
    %580 = vmatprep.subr.bf16.mxu0 0
    %581 = vmatpush1.bf16.msra.mxu0 0
    %582 = vmatprep.mubr.bf16.mxu0 0
    %583 = vmatmul.mubr.bf16.gmra.mrb[0].mxu0 %v213
    %v584 = vpop.f32.mrb[0].mxu0
    %v585 = vadd.f32 0.0, %v584
    %v586 = vpop.f32.mrb[0].mxu0
    %v587 = vadd.f32 0.0, %v586
    %v588 = vpop.f32.mrb[0].mxu0
    %v589 = vadd.f32 0.0, %v588
    %v590 = vpop.f32.mrb[0].mxu0
    %v591 = vadd.f32 0.0, %v590
    %592 = vmatprep.mubr.bf16.mxu0 0
    %593 = vmatmul.mubr.bf16.gmra.mrb[0].mxu0 %v214
    %v594 = vpop.f32.mrb[0].mxu0
    %v595 = vadd.f32 0.0, %v594
    %v596 = vpop.f32.mrb[0].mxu0
    %v597 = vadd.f32 0.0, %v596
    %v598 = vpop.f32.mrb[0].mxu0
    %v599 = vadd.f32 0.0, %v598
    %v600 = vpop.f32.mrb[0].mxu0
    %v601 = vadd.f32 0.0, %v600
    %602 = vmatprep.mubr.bf16.mxu0 0
    %603 = vmatmul.mubr.bf16.gmra.mrb[0].mxu0 %v215
    %v604 = vpop.f32.mrb[0].mxu0
    %v605 = vadd.f32 0.0, %v604
    %v606 = vpop.f32.mrb[0].mxu0
    %v607 = vadd.f32 0.0, %v606
    %v608 = vpop.f32.mrb[0].mxu0
    %v609 = vadd.f32 0.0, %v608
    %v610 = vpop.f32.mrb[0].mxu0
    %v611 = vadd.f32 0.0, %v610
    %612 = vmatprep.mubr.bf16.mxu0 0
    %613 = vmatmul.mubr.bf16.gmra.mrb[0].mxu0 %v216
    %v614 = vpop.f32.mrb[0].mxu0
    %v615 = vadd.f32 0.0, %v614
    %v616 = vpop.f32.mrb[0].mxu0
    %v617 = vadd.f32 0.0, %v616
    %v618 = vpop.f32.mrb[0].mxu0
    %v619 = vadd.f32 0.0, %v618
    %v620 = vpop.f32.mrb[0].mxu0
    %v621 = vadd.f32 0.0, %v620
    %622 = vmatprep.mubr.bf16.mxu0 0
    %623 = vmatmul.mubr.bf16.gmra.mrb[0].mxu0 %v217
    %v624 = vpop.f32.mrb[0].mxu0
    %v625 = vadd.f32 0.0, %v624
    %v626 = vpop.f32.mrb[0].mxu0
    %v627 = vadd.f32 0.0, %v626
    %v628 = vpop.f32.mrb[0].mxu0
    %v629 = vadd.f32 0.0, %v628
    %v630 = vpop.f32.mrb[0].mxu0
    %v631 = vadd.f32 0.0, %v630
    %632 = vmatprep.mubr.bf16.mxu0 0
    %633 = vmatmul.mubr.bf16.gmra.mrb[0].mxu0 %v218
    %v634 = vpop.f32.mrb[0].mxu0
    %v635 = vadd.f32 0.0, %v634
    %v636 = vpop.f32.mrb[0].mxu0
    %v637 = vadd.f32 0.0, %v636
    %v638 = vpop.f32.mrb[0].mxu0
    %v639 = vadd.f32 0.0, %v638
    %v640 = vpop.f32.mrb[0].mxu0
    %v641 = vadd.f32 0.0, %v640
    %642 = vmatprep.mubr.bf16.mxu0 0
    %643 = vmatmul.mubr.bf16.gmra.mrb[0].mxu0 %v219
    %v644 = vpop.f32.mrb[0].mxu0
    %v645 = vadd.f32 0.0, %v644
    %v646 = vpop.f32.mrb[0].mxu0
    %v647 = vadd.f32 0.0, %v646
    %v648 = vpop.f32.mrb[0].mxu0
    %v649 = vadd.f32 0.0, %v648
    %v650 = vpop.f32.mrb[0].mxu0
    %v651 = vadd.f32 0.0, %v650
    %652 = vmatprep.mubr.bf16.mxu0 0
    %653 = vmatmul.mubr.bf16.gmra.mrb[0].mxu0 %v220
    %v654 = vpop.f32.mrb[0].mxu0
    %v655 = vadd.f32 0.0, %v654
    %v656 = vpop.f32.mrb[0].mxu0
    %v657 = vadd.f32 0.0, %v656
    %v658 = vpop.f32.mrb[0].mxu0
    %v659 = vadd.f32 0.0, %v658
    %v660 = vpop.f32.mrb[0].mxu0
    %v661 = vadd.f32 0.0, %v660
    %662 = vmatprep.mubr.bf16.mxu0 0
    %663 = vmatmul.mubr.bf16.gmra.mrb[0].mxu0 %v221
    %v664 = vpop.f32.mrb[0].mxu0
    %v665 = vadd.f32 0.0, %v664
    %v666 = vpop.f32.mrb[0].mxu0
    %v667 = vadd.f32 0.0, %v666
    %v668 = vpop.f32.mrb[0].mxu0
    %v669 = vadd.f32 0.0, %v668
    %v670 = vpop.f32.mrb[0].mxu0
    %v671 = vadd.f32 0.0, %v670
    %672 = vmatprep.mubr.bf16.mxu0 0
    %673 = vmatmul.mubr.bf16.gmra.mrb[0].mxu0 %v222
    %v674 = vpop.f32.mrb[0].mxu0
    %v675 = vadd.f32 0.0, %v674
    %v676 = vpop.f32.mrb[0].mxu0
    %v677 = vadd.f32 0.0, %v676
    %v678 = vpop.f32.mrb[0].mxu0
    %v679 = vadd.f32 0.0, %v678
    %v680 = vpop.f32.mrb[0].mxu0
    %v681 = vadd.f32 0.0, %v680
    %682 = vmatprep.mubr.bf16.mxu0 0
    %683 = vmatmul.mubr.bf16.gmra.mrb[0].mxu0 %v223
    %v684 = vpop.f32.mrb[0].mxu0
    %v685 = vadd.f32 0.0, %v684
    %v686 = vpop.f32.mrb[0].mxu0
    %v687 = vadd.f32 0.0, %v686
    %v688 = vpop.f32.mrb[0].mxu0
    %v689 = vadd.f32 0.0, %v688
    %v690 = vpop.f32.mrb[0].mxu0
    %v691 = vadd.f32 0.0, %v690
    %692 = vmatprep.mubr.bf16.mxu0 0
    %693 = vmatmul.mubr.bf16.gmra.mrb[0].mxu0 %v224
    %v694 = vpop.f32.mrb[0].mxu0
    %v695 = vadd.f32 0.0, %v694
    %v696 = vpop.f32.mrb[0].mxu0
    %v697 = vadd.f32 0.0, %v696
    %v698 = vpop.f32.mrb[0].mxu0
    %v699 = vadd.f32 0.0, %v698
    %v700 = vpop.f32.mrb[0].mxu0
    %v701 = vadd.f32 0.0, %v700
    %702 = vdwg.mxu0
    %703 = vst [vmem:[#allocation2] sm:$0xff] %v432
    %704 = vst [vmem:[#allocation2 + $0x8] sm:$0xff] %v434
    %705 = vst [vmem:[#allocation2 + $0x10] sm:$0xff] %v585
    %706 = vst [vmem:[#allocation2 + $0x18] sm:$0xff] %v587
    %707 = vst [vmem:[#allocation2 + $0x20] sm:$0xff] %v436
    %708 = vst [vmem:[#allocation2 + $0x28] sm:$0xff] %v438
    %709 = vst [vmem:[#allocation2 + $0x30] sm:$0xff] %v589
    %710 = vst [vmem:[#allocation2 + $0x38] sm:$0xff] %v591
    %711 = vst [vmem:[#allocation2 + $0x40] sm:$0xff] %v442
    %712 = vst [vmem:[#allocation2 + $0x48] sm:$0xff] %v444
    %713 = vst [vmem:[#allocation2 + $0x50] sm:$0xff] %v595
    %714 = vst [vmem:[#allocation2 + $0x58] sm:$0xff] %v597
    %715 = vst [vmem:[#allocation2 + $0x60] sm:$0xff] %v446
    %716 = vst [vmem:[#allocation2 + $0x68] sm:$0xff] %v448
    %717 = vst [vmem:[#allocation2 + $0x70] sm:$0xff] %v599
    %718 = vst [vmem:[#allocation2 + $0x78] sm:$0xff] %v601
    %719 = vst [vmem:[#allocation2 + $0x80] sm:$0xff] %v452
    %720 = vst [vmem:[#allocation2 + $0x88] sm:$0xff] %v454
    %721 = vst [vmem:[#allocation2 + $0x90] sm:$0xff] %v605
    %722 = vst [vmem:[#allocation2 + $0x98] sm:$0xff] %v607
    %723 = vst [vmem:[#allocation2 + $0xa0] sm:$0xff] %v456
    %724 = vst [vmem:[#allocation2 + $0xa8] sm:$0xff] %v458
    %725 = vst [vmem:[#allocation2 + $0xb0] sm:$0xff] %v609
    %726 = vst [vmem:[#allocation2 + $0xb8] sm:$0xff] %v611
    %727 = vst [vmem:[#allocation2 + $0xc0] sm:$0xff] %v462
    %728 = vst [vmem:[#allocation2 + $0xc8] sm:$0xff] %v464
    %729 = vst [vmem:[#allocation2 + $0xd0] sm:$0xff] %v615
    %730 = vst [vmem:[#allocation2 + $0xd8] sm:$0xff] %v617
    %731 = vst [vmem:[#allocation2 + $0xe0] sm:$0xff] %v466
    %732 = vst [vmem:[#allocation2 + $0xe8] sm:$0xff] %v468
    %733 = vst [vmem:[#allocation2 + $0xf0] sm:$0xff] %v619
    %734 = vst [vmem:[#allocation2 + $0xf8] sm:$0xff] %v621
    %735 = vst [vmem:[#allocation2 + $0x100] sm:$0xff] %v472
    %736 = vst [vmem:[#allocation2 + $0x108] sm:$0xff] %v474
    %737 = vst [vmem:[#allocation2 + $0x110] sm:$0xff] %v625
    %738 = vst [vmem:[#allocation2 + $0x118] sm:$0xff] %v627
    %739 = vst [vmem:[#allocation2 + $0x120] sm:$0xff] %v476
    %740 = vst [vmem:[#allocation2 + $0x128] sm:$0xff] %v478
    %741 = vst [vmem:[#allocation2 + $0x130] sm:$0xff] %v629
    %742 = vst [vmem:[#allocation2 + $0x138] sm:$0xff] %v631
    %743 = vst [vmem:[#allocation2 + $0x140] sm:$0xff] %v482
    %744 = vst [vmem:[#allocation2 + $0x148] sm:$0xff] %v484
    %745 = vst [vmem:[#allocation2 + $0x150] sm:$0xff] %v635
    %746 = vst [vmem:[#allocation2 + $0x158] sm:$0xff] %v637
    %747 = vst [vmem:[#allocation2 + $0x160] sm:$0xff] %v486
    %748 = vst [vmem:[#allocation2 + $0x168] sm:$0xff] %v488
    %749 = vst [vmem:[#allocation2 + $0x170] sm:$0xff] %v639
    %750 = vst [vmem:[#allocation2 + $0x178] sm:$0xff] %v641
    %751 = vst [vmem:[#allocation2 + $0x180] sm:$0xff] %v492
    %752 = vst [vmem:[#allocation2 + $0x188] sm:$0xff] %v494
    %753 = vst [vmem:[#allocation2 + $0x190] sm:$0xff] %v645
    %754 = vst [vmem:[#allocation2 + $0x198] sm:$0xff] %v647
    %755 = vst [vmem:[#allocation2 + $0x1a0] sm:$0xff] %v496
    %756 = vst [vmem:[#allocation2 + $0x1a8] sm:$0xff] %v498
    %757 = vst [vmem:[#allocation2 + $0x1b0] sm:$0xff] %v649
    %758 = vst [vmem:[#allocation2 + $0x1b8] sm:$0xff] %v651
    %759 = vst [vmem:[#allocation2 + $0x1c0] sm:$0xff] %v502
    %760 = vst [vmem:[#allocation2 + $0x1c8] sm:$0xff] %v504
    %761 = vst [vmem:[#allocation2 + $0x1d0] sm:$0xff] %v655
    %762 = vst [vmem:[#allocation2 + $0x1d8] sm:$0xff] %v657
    %763 = vst [vmem:[#allocation2 + $0x1e0] sm:$0xff] %v506
    %764 = vst [vmem:[#allocation2 + $0x1e8] sm:$0xff] %v508
    %765 = vst [vmem:[#allocation2 + $0x1f0] sm:$0xff] %v659
    %766 = vst [vmem:[#allocation2 + $0x1f8] sm:$0xff] %v661
    %767 = vst [vmem:[#allocation2 + $0x200] sm:$0xff] %v512
    %768 = vst [vmem:[#allocation2 + $0x208] sm:$0xff] %v514
    %769 = vst [vmem:[#allocation2 + $0x210] sm:$0xff] %v665
    %770 = vst [vmem:[#allocation2 + $0x218] sm:$0xff] %v667
    %771 = vst [vmem:[#allocation2 + $0x220] sm:$0xff] %v516
    %772 = vst [vmem:[#allocation2 + $0x228] sm:$0xff] %v518
    %773 = vst [vmem:[#allocation2 + $0x230] sm:$0xff] %v669
    %774 = vst [vmem:[#allocation2 + $0x238] sm:$0xff] %v671
    %775 = vst [vmem:[#allocation2 + $0x240] sm:$0xff] %v522
    %776 = vst [vmem:[#allocation2 + $0x248] sm:$0xff] %v524
    %777 = vst [vmem:[#allocation2 + $0x250] sm:$0xff] %v675
    %778 = vst [vmem:[#allocation2 + $0x258] sm:$0xff] %v677
    %779 = vst [vmem:[#allocation2 + $0x260] sm:$0xff] %v526
    %780 = vst [vmem:[#allocation2 + $0x268] sm:$0xff] %v528
    %781 = vst [vmem:[#allocation2 + $0x270] sm:$0xff] %v679
    %782 = vst [vmem:[#allocation2 + $0x278] sm:$0xff] %v681
    %783 = vst [vmem:[#allocation2 + $0x280] sm:$0xff] %v532
    %784 = vst [vmem:[#allocation2 + $0x288] sm:$0xff] %v534
    %785 = vst [vmem:[#allocation2 + $0x290] sm:$0xff] %v685
    %786 = vst [vmem:[#allocation2 + $0x298] sm:$0xff] %v687
    %787 = vst [vmem:[#allocation2 + $0x2a0] sm:$0xff] %v536
    %788 = vst [vmem:[#allocation2 + $0x2a8] sm:$0xff] %v538
    %789 = vst [vmem:[#allocation2 + $0x2b0] sm:$0xff] %v689
    %790 = vst [vmem:[#allocation2 + $0x2b8] sm:$0xff] %v691
    %791 = vst [vmem:[#allocation2 + $0x2c0] sm:$0xff] %v542
    %792 = vst [vmem:[#allocation2 + $0x2c8] sm:$0xff] %v544
    %793 = vst [vmem:[#allocation2 + $0x2d0] sm:$0xff] %v695
    %794 = vst [vmem:[#allocation2 + $0x2d8] sm:$0xff] %v697
    %795 = vst [vmem:[#allocation2 + $0x2e0] sm:$0xff] %v546
    %796 = vst [vmem:[#allocation2 + $0x2e8] sm:$0xff] %v548
    %797 = vst [vmem:[#allocation2 + $0x2f0] sm:$0xff] %v699
    %798 = vst [vmem:[#allocation2 + $0x2f8] sm:$0xff] %v701
    %s799 = smul.u32 0, 12
    %s800 = ssub.s32 12, %s799
    %p801 = scmp.lt.s32.totalorder %s800, 12
    %s802 = scalar_select %p801, %s800, 12
    // While loop
    $region50: #{tpu_custom_call.1} parent=1 // loop_pre_header
      _
    $region51: #{tpu_custom_call.1} parent=1 // loop_header
      %s804 = sphi 0, %s806
      %p805 = scmp.ge.s32.totalorder %s804, %s802
    $region52: #{tpu_custom_call.1} parent=1 // loop_header_branch
      %808 = sbr.rel (%p805) target = $region56
    $region53: #{tpu_custom_call.1} parent=1 // loop_body
      %v809 = vld [vmem:[#allocation3] sm:$0xff]
      %v810 = vld [vmem:[#allocation3 + $0x8] sm:$0xff]
      %v811 = vld [vmem:[#allocation4] sm:$0xff]
      %v812 = vld [vmem:[#allocation4 + $0x8] sm:$0xff]
      %s813 = smul.u32 %s804, 8
      %s814 = smul.addr %s813, 8
      %s815 = scalar_lea.vmem [#allocation2], %s814
      %v816 = vld [vmem:[%s815] sm:$0xff]
      %v817 = vld [vmem:[%s815 + $0x8] sm:$0xff]
      %v818 = vld [vmem:[%s815 + $0x10] sm:$0xff]
      %v819 = vld [vmem:[%s815 + $0x18] sm:$0xff]
      %v820 = vld [vmem:[%s815 + $0x20] sm:$0xff]
      %v821 = vld [vmem:[%s815 + $0x28] sm:$0xff]
      %v822 = vld [vmem:[%s815 + $0x30] sm:$0xff]
      %v823 = vld [vmem:[%s815 + $0x38] sm:$0xff]
      %v824 = vpack.c.bf16 %v810, %v809
      %v825 = vld [vmem:[#allocation13] sm:$0xff]
      %v826 = vld [vmem:[#allocation13 + $0x8] sm:$0xff]
      %v827 = vld [vmem:[#allocation13 + $0x10] sm:$0xff]
      %v828 = vld [vmem:[#allocation13 + $0x18] sm:$0xff]
      %v829 = vld [vmem:[#allocation13 + $0x20] sm:$0xff]
      %v830 = vld [vmem:[#allocation13 + $0x28] sm:$0xff]
      %v831 = vld [vmem:[#allocation13 + $0x30] sm:$0xff]
      %v832 = vld [vmem:[#allocation13 + $0x38] sm:$0xff]
      %v833 = vld [vmem:[#allocation13 + $0x40] sm:$0xff]
      %v834 = vld [vmem:[#allocation13 + $0x48] sm:$0xff]
      %v835 = vld [vmem:[#allocation13 + $0x50] sm:$0xff]
      %v836 = vld [vmem:[#allocation13 + $0x58] sm:$0xff]
      %v837 = vld [vmem:[#allocation13 + $0x60] sm:$0xff]
      %v838 = vld [vmem:[#allocation13 + $0x68] sm:$0xff]
      %v839 = vld [vmem:[#allocation13 + $0x70] sm:$0xff]
      %v840 = vld [vmem:[#allocation13 + $0x78] sm:$0xff]
      %v841 = vld [vmem:[#allocation13 + $0x80] sm:$0xff]
      %v842 = vld [vmem:[#allocation13 + $0x88] sm:$0xff]
      %v843 = vld [vmem:[#allocation13 + $0x90] sm:$0xff]
      %v844 = vld [vmem:[#allocation13 + $0x98] sm:$0xff]
      %v845 = vld [vmem:[#allocation13 + $0xa0] sm:$0xff]
      %v846 = vld [vmem:[#allocation13 + $0xa8] sm:$0xff]
      %v847 = vld [vmem:[#allocation13 + $0xb0] sm:$0xff]
      %v848 = vld [vmem:[#allocation13 + $0xb8] sm:$0xff]
      %v849 = vld [vmem:[#allocation13 + $0xc0] sm:$0xff]
      %v850 = vld [vmem:[#allocation13 + $0xc8] sm:$0xff]
      %v851 = vld [vmem:[#allocation13 + $0xd0] sm:$0xff]
      %v852 = vld [vmem:[#allocation13 + $0xd8] sm:$0xff]
      %v853 = vld [vmem:[#allocation13 + $0xe0] sm:$0xff]
      %v854 = vld [vmem:[#allocation13 + $0xe8] sm:$0xff]
      %v855 = vld [vmem:[#allocation13 + $0xf0] sm:$0xff]
      %v856 = vld [vmem:[#allocation13 + $0xf8] sm:$0xff]
      %v889 = vunpack.c.l.b16 %v825
      %v890 = vunpack.c.h.b16 %v825
      %v891 = vunpack.c.l.b16 %v826
      %v892 = vunpack.c.h.b16 %v826
      %v893 = vunpack.c.l.b16 %v827
      %v894 = vunpack.c.h.b16 %v827
      %v895 = vunpack.c.l.b16 %v828
      %v896 = vunpack.c.h.b16 %v828
      %v897 = vunpack.c.l.b16 %v829
      %v898 = vunpack.c.h.b16 %v829
      %v899 = vunpack.c.l.b16 %v830
      %v900 = vunpack.c.h.b16 %v830
      %v901 = vunpack.c.l.b16 %v831
      %v902 = vunpack.c.h.b16 %v831
      %v903 = vunpack.c.l.b16 %v832
      %v904 = vunpack.c.h.b16 %v832
      %v905 = vunpack.c.l.b16 %v833
      %v906 = vunpack.c.h.b16 %v833
      %v907 = vunpack.c.l.b16 %v834
      %v908 = vunpack.c.h.b16 %v834
      %v909 = vunpack.c.l.b16 %v835
      %v910 = vunpack.c.h.b16 %v835
      %v911 = vunpack.c.l.b16 %v836
      %v912 = vunpack.c.h.b16 %v836
      %v913 = vunpack.c.l.b16 %v837
      %v914 = vunpack.c.h.b16 %v837
      %v915 = vunpack.c.l.b16 %v838
      %v916 = vunpack.c.h.b16 %v838
      %v917 = vunpack.c.l.b16 %v839
      %v918 = vunpack.c.h.b16 %v839
      %v919 = vunpack.c.l.b16 %v840
      %v920 = vunpack.c.h.b16 %v840
      %v921 = vunpack.c.l.b16 %v841
      %v922 = vunpack.c.h.b16 %v841
      %v923 = vunpack.c.l.b16 %v842
      %v924 = vunpack.c.h.b16 %v842
      %v925 = vunpack.c.l.b16 %v843
      %v926 = vunpack.c.h.b16 %v843
      %v927 = vunpack.c.l.b16 %v844
      %v928 = vunpack.c.h.b16 %v844
      %v929 = vunpack.c.l.b16 %v845
      %v930 = vunpack.c.h.b16 %v845
      %v931 = vunpack.c.l.b16 %v846
      %v932 = vunpack.c.h.b16 %v846
      %v933 = vunpack.c.l.b16 %v847
      %v934 = vunpack.c.h.b16 %v847
      %v935 = vunpack.c.l.b16 %v848
      %v936 = vunpack.c.h.b16 %v848
      %v937 = vunpack.c.l.b16 %v849
      %v938 = vunpack.c.h.b16 %v849
      %v939 = vunpack.c.l.b16 %v850
      %v940 = vunpack.c.h.b16 %v850
      %v941 = vunpack.c.l.b16 %v851
      %v942 = vunpack.c.h.b16 %v851
      %v943 = vunpack.c.l.b16 %v852
      %v944 = vunpack.c.h.b16 %v852
      %v945 = vunpack.c.l.b16 %v853
      %v946 = vunpack.c.h.b16 %v853
      %v947 = vunpack.c.l.b16 %v854
      %v948 = vunpack.c.h.b16 %v854
      %v949 = vunpack.c.l.b16 %v855
      %v950 = vunpack.c.h.b16 %v855
      %v951 = vunpack.c.l.b16 %v856
      %v952 = vunpack.c.h.b16 %v856
      %v953 = vpack.c.b16 %v893, %v889
      %v954 = vpack.c.b16 %v894, %v890
      %v955 = vpack.c.b16 %v895, %v891
      %v956 = vpack.c.b16 %v896, %v892
      %v957 = vpack.c.b16 %v901, %v897
      %v958 = vpack.c.b16 %v902, %v898
      %v959 = vpack.c.b16 %v903, %v899
      %v960 = vpack.c.b16 %v904, %v900
      %v961 = vpack.c.b16 %v909, %v905
      %v962 = vpack.c.b16 %v910, %v906
      %v963 = vpack.c.b16 %v911, %v907
      %v964 = vpack.c.b16 %v912, %v908
      %v965 = vpack.c.b16 %v917, %v913
      %v966 = vpack.c.b16 %v918, %v914
      %v967 = vpack.c.b16 %v919, %v915
      %v968 = vpack.c.b16 %v920, %v916
      %v969 = vpack.c.b16 %v925, %v921
      %v970 = vpack.c.b16 %v926, %v922
      %v971 = vpack.c.b16 %v927, %v923
      %v972 = vpack.c.b16 %v928, %v924
      %v973 = vpack.c.b16 %v933, %v929
      %v974 = vpack.c.b16 %v934, %v930
      %v975 = vpack.c.b16 %v935, %v931
      %v976 = vpack.c.b16 %v936, %v932
      %v977 = vpack.c.b16 %v941, %v937
      %v978 = vpack.c.b16 %v942, %v938
      %v979 = vpack.c.b16 %v943, %v939
      %v980 = vpack.c.b16 %v944, %v940
      %v981 = vpack.c.b16 %v949, %v945
      %v982 = vpack.c.b16 %v950, %v946
      %v983 = vpack.c.b16 %v951, %v947
      %v984 = vpack.c.b16 %v952, %v948
      %1017 = vmatprep.subr.bf16.mxu0 %v954
      %1018 = vmatpush1.bf16.msra.mxu0 %v953
      %1019 = vmatprep.subr.bf16.mxu0 %v958
      %1020 = vmatpush1.bf16.msra.mxu0 %v957
      %1021 = vmatprep.subr.bf16.mxu0 %v962
      %1022 = vmatpush1.bf16.msra.mxu0 %v961
      %1023 = vmatprep.subr.bf16.mxu0 %v966
      %1024 = vmatpush1.bf16.msra.mxu0 %v965
      %1025 = vmatprep.subr.bf16.mxu0 %v970
      %1026 = vmatpush1.bf16.msra.mxu0 %v969
      %1027 = vmatprep.subr.bf16.mxu0 %v974
      %1028 = vmatpush1.bf16.msra.mxu0 %v973
      %1029 = vmatprep.subr.bf16.mxu0 %v978
      %1030 = vmatpush1.bf16.msra.mxu0 %v977
      %1031 = vmatprep.subr.bf16.mxu0 %v982
      %1032 = vmatpush1.bf16.msra.mxu0 %v981
      %1033 = vmatprep.subr.bf16.mxu0 0
      %1034 = vmatpush1.bf16.msra.mxu0 0
      %1035 = vmatprep.subr.bf16.mxu0 0
      %1036 = vmatpush1.bf16.msra.mxu0 0
      %1037 = vmatprep.subr.bf16.mxu0 0
      %1038 = vmatpush1.bf16.msra.mxu0 0
      %1039 = vmatprep.subr.bf16.mxu0 0
      %1040 = vmatpush1.bf16.msra.mxu0 0
      %1041 = vmatprep.subr.bf16.mxu0 0
      %1042 = vmatpush1.bf16.msra.mxu0 0
      %1043 = vmatprep.subr.bf16.mxu0 0
      %1044 = vmatpush1.bf16.msra.mxu0 0
      %1045 = vmatprep.subr.bf16.mxu0 0
      %1046 = vmatpush1.bf16.msra.mxu0 0
      %1047 = vmatprep.subr.bf16.mxu0 0
      %1048 = vmatpush1.bf16.msra.mxu0 0
      %1049 = vmatprep.mubr.bf16.mxu0 0
      %1050 = vmatmul.mubr.bf16.gmra.mrb[0].mxu0 %v824
      %v1051 = vpop.f32.mrb[0].mxu0
      %v1052 = vadd.f32 0.0, %v1051
      %v1053 = vpop.f32.mrb[0].mxu0
      %v1054 = vadd.f32 0.0, %v1053
      %v1055 = vpop.f32.mrb[0].mxu0
      %v1056 = vadd.f32 0.0, %v1055
      %v1057 = vpop.f32.mrb[0].mxu0
      %v1058 = vadd.f32 0.0, %v1057
      %1059 = vdwg.mxu0
      %1060 = vmatprep.subr.bf16.mxu0 %v956
      %1061 = vmatpush1.bf16.msra.mxu0 %v955
      %1062 = vmatprep.subr.bf16.mxu0 %v960
      %1063 = vmatpush1.bf16.msra.mxu0 %v959
      %1064 = vmatprep.subr.bf16.mxu0 %v964
      %1065 = vmatpush1.bf16.msra.mxu0 %v963
      %1066 = vmatprep.subr.bf16.mxu0 %v968
      %1067 = vmatpush1.bf16.msra.mxu0 %v967
      %1068 = vmatprep.subr.bf16.mxu0 %v972
      %1069 = vmatpush1.bf16.msra.mxu0 %v971
      %1070 = vmatprep.subr.bf16.mxu0 %v976
      %1071 = vmatpush1.bf16.msra.mxu0 %v975
      %1072 = vmatprep.subr.bf16.mxu0 %v980
      %1073 = vmatpush1.bf16.msra.mxu0 %v979
      %1074 = vmatprep.subr.bf16.mxu0 %v984
      %1075 = vmatpush1.bf16.msra.mxu0 %v983
      %1076 = vmatprep.subr.bf16.mxu0 0
      %1077 = vmatpush1.bf16.msra.mxu0 0
      %1078 = vmatprep.subr.bf16.mxu0 0
      %1079 = vmatpush1.bf16.msra.mxu0 0
      %1080 = vmatprep.subr.bf16.mxu0 0
      %1081 = vmatpush1.bf16.msra.mxu0 0
      %1082 = vmatprep.subr.bf16.mxu0 0
      %1083 = vmatpush1.bf16.msra.mxu0 0
      %1084 = vmatprep.subr.bf16.mxu0 0
      %1085 = vmatpush1.bf16.msra.mxu0 0
      %1086 = vmatprep.subr.bf16.mxu0 0
      %1087 = vmatpush1.bf16.msra.mxu0 0
      %1088 = vmatprep.subr.bf16.mxu0 0
      %1089 = vmatpush1.bf16.msra.mxu0 0
      %1090 = vmatprep.subr.bf16.mxu0 0
      %1091 = vmatpush1.bf16.msra.mxu0 0
      %1092 = vmatprep.mubr.bf16.mxu0 0
      %1093 = vmatmul.mubr.bf16.gmra.mrb[0].mxu0 %v824
      %v1094 = vpop.f32.mrb[0].mxu0
      %v1095 = vadd.f32 0.0, %v1094
      %v1096 = vpop.f32.mrb[0].mxu0
      %v1097 = vadd.f32 0.0, %v1096
      %v1098 = vpop.f32.mrb[0].mxu0
      %v1099 = vadd.f32 0.0, %v1098
      %v1100 = vpop.f32.mrb[0].mxu0
      %v1101 = vadd.f32 0.0, %v1100
      %1102 = vdwg.mxu0
      %v1103 = vadd.f32 %v816, %v1052
      %v1104 = vadd.f32 %v817, %v1054
      %v1105 = vadd.f32 %v818, %v1095
      %v1106 = vadd.f32 %v819, %v1097
      %v1107 = vadd.f32 %v820, %v1056
      %v1108 = vadd.f32 %v821, %v1058
      %v1109 = vadd.f32 %v822, %v1099
      %v1110 = vadd.f32 %v823, %v1101
      %v1111 = vld [vmem:[%s5] sm:$0xf]
      %v1113 = vlaneseq
      %v1114 = vshrl.u32 %v1113, 7
      %v1115 = vsub.s32 0, %v1114
      %v1116 = vrot.slane %v1111, %v1115
      %v1117 = vlaneseq
      %v1118 = vshrl.u32 %v1117, 7
      %v1119 = vsub.s32 1, %v1118
      %v1120 = vrot.slane %v1111, %v1119
      %v1121 = vlaneseq
      %v1122 = vshrl.u32 %v1121, 7
      %v1123 = vsub.s32 2, %v1122
      %v1124 = vrot.slane %v1111, %v1123
      %v1125 = vlaneseq
      %v1126 = vshrl.u32 %v1125, 7
      %v1127 = vsub.s32 3, %v1126
      %v1128 = vrot.slane %v1111, %v1127
      %v1133 = vadd.f32 %v1103, %v1116
      %v1134 = vadd.f32 %v1104, %v1120
      %v1135 = vadd.f32 %v1105, %v1124
      %v1136 = vadd.f32 %v1106, %v1128
      %v1137 = vadd.f32 %v1107, %v1116
      %v1138 = vadd.f32 %v1108, %v1120
      %v1139 = vadd.f32 %v1109, %v1124
      %v1140 = vadd.f32 %v1110, %v1128
      %v1141 = vxor.u32 %v1133, 2147483648
      %v1142 = vxor.u32 %v1137, 2147483648
      %v1143 = vmul.f32 %v1141, 1.442695
      %v1144 = vpow.pop %v1143
      %v1145 = vmul.f32 %v1142, 1.442695
      %v1146 = vpow.pop %v1145
      %v1147 = vadd.f32 %v1144, 1.0
      %v1148 = vadd.f32 %v1146, 1.0
      %v1149 = vrcp.pop %v1147
      %v1150 = vmul.f32 1.0, %v1149
      %v1151 = vrcp.pop %v1148
      %v1152 = vmul.f32 1.0, %v1151
      %v1153 = vxor.u32 %v1134, 2147483648
      %v1154 = vxor.u32 %v1138, 2147483648
      %v1155 = vmul.f32 %v1153, 1.442695
      %v1156 = vpow.pop %v1155
      %v1157 = vmul.f32 %v1154, 1.442695
      %v1158 = vpow.pop %v1157
      %v1159 = vadd.f32 %v1156, 1.0
      %v1160 = vadd.f32 %v1158, 1.0
      %v1161 = vrcp.pop %v1159
      %v1162 = vmul.f32 1.0, %v1161
      %v1163 = vrcp.pop %v1160
      %v1164 = vmul.f32 1.0, %v1163
      %v1165 = vtanh.pop %v1135
      %v1166 = vtanh.pop %v1139
      %v1167 = vxor.u32 %v1136, 2147483648
      %v1168 = vxor.u32 %v1140, 2147483648
      %v1169 = vmul.f32 %v1167, 1.442695
      %v1170 = vpow.pop %v1169
      %v1171 = vmul.f32 %v1168, 1.442695
      %v1172 = vpow.pop %v1171
      %v1173 = vadd.f32 %v1170, 1.0
      %v1174 = vadd.f32 %v1172, 1.0
      %v1175 = vrcp.pop %v1173
      %v1176 = vmul.f32 1.0, %v1175
      %v1177 = vrcp.pop %v1174
      %v1178 = vmul.f32 1.0, %v1177
      %v1179 = vmul.f32 %v1162, %v811
      %v1180 = vmul.f32 %v1164, %v812
      %v1181 = vmul.f32 %v1150, %v1165
      %v1182 = vmul.f32 %v1152, %v1166
      %v1183 = vadd.f32 %v1179, %v1181
      %v1184 = vadd.f32 %v1180, %v1182
      %v1185 = vtanh.pop %v1183
      %v1186 = vtanh.pop %v1184
      %v1187 = vmul.f32 %v1176, %v1185
      %v1188 = vmul.f32 %v1178, %v1186
      %1189 = vst [vmem:[#allocation3] sm:$0xff] %v1187
      %1190 = vst [vmem:[#allocation3 + $0x8] sm:$0xff] %v1188
      %1191 = vst [vmem:[#allocation4] sm:$0xff] %v1183
      %1192 = vst [vmem:[#allocation4 + $0x8] sm:$0xff] %v1184
      %v1193 = vpack.c.bf16 %v1188, %v1187
      %v1195 = vunpack.c.l.b16 %v1193
      %v1196 = vunpack.c.h.b16 %v1193
      %v1197 = vpack.c.b16 %v1195, %v1195
      %v1198 = vpack.c.b16 %v1196, %v1196
      %s1201 = smul.u32 %s804, 2
      %s1202 = smul.addr %s1201, 4
      %s1203 = scalar_lea.vmem [#allocation14], %s1202
      %1204 = vst [vmem:[%s1203] sm:$0xf] %v1197
      %1205 = vst [vmem:[%s1203 + $0x4] sm:$0xf] %v1198
    $region54: #{tpu_custom_call.1} parent=1 // loop_footer
      %s806 = sadd.s32 %s804, 1
    $region55: #{tpu_custom_call.1} parent=1 // loop_footer_branch
      %803 = sbr.rel target = $region51
    $region56: #{tpu_custom_call.1} parent=1 // loop_exit
      _
    %v1206 = vld [vmem:[#allocation3] sm:$0xff]
    %v1207 = vld [vmem:[#allocation3 + $0x8] sm:$0xff]
    %1208 = vst [vmem:[#allocation15] sm:$0xff] %v1206
    %1209 = vst [vmem:[#allocation15 + $0x8] sm:$0xff] %v1207
    %v1210 = vld [vmem:[#allocation4] sm:$0xff]
    %v1211 = vld [vmem:[#allocation4 + $0x8] sm:$0xff]
    %1212 = vst [vmem:[#allocation17] sm:$0xff] %v1210
    %1213 = vst [vmem:[#allocation17 + $0x8] sm:$0xff] %v1211
    // Predicated region
    $region57: #{tpu_custom_call.1} parent=1 // pred_check
      _
    $region58: #{tpu_custom_call.1} parent=1 // pred_check_branch
      %1215 = sbr.rel (0) target = $region60
    $region59: #{tpu_custom_call.1} parent=1 // pred_region
      %s1217 = ssub.s32 1536, 1536
      %1218 = vsyncadd [#allocation7], %s1217
      %s1219 = sshll.u32 [#allocation14], 4
      %s1220 = int_to_ptr.vmem [resolvable:$true] %s1219
      %1225 = dma.vmem_to_hbm [thread:$0]  %s1220, 1536, %s6, [#allocation7], 64, 64, 4
    $region60: #{tpu_custom_call.1} parent=1 // pred_fallthru
      _
    // Predicated region
    $region61: #{tpu_custom_call.1} parent=1 // pred_check
      _
    $region62: #{tpu_custom_call.1} parent=1 // pred_check_branch
      %1227 = sbr.rel (0) target = $region64
    $region63: #{tpu_custom_call.1} parent=1 // pred_region
      %s1229 = ssub.s32 256, 256
      %1230 = vsyncadd [#allocation16], %s1229
      %s1231 = sshll.u32 [#allocation15], 4
      %s1232 = int_to_ptr.vmem [resolvable:$true] %s1231
      %1237 = dma.vmem_to_hbm [thread:$0]  %s1232, 256, %s7, [#allocation16], 128, 128, 8
    $region64: #{tpu_custom_call.1} parent=1 // pred_fallthru
      _
    // Predicated region
    $region65: #{tpu_custom_call.1} parent=1 // pred_check
      _
    $region66: #{tpu_custom_call.1} parent=1 // pred_check_branch
      %1239 = sbr.rel (0) target = $region68
    $region67: #{tpu_custom_call.1} parent=1 // pred_region
      %s1241 = ssub.s32 256, 256
      %1242 = vsyncadd [#allocation16], %s1241
      %s1243 = sshll.u32 [#allocation17], 4
      %s1244 = int_to_ptr.vmem [resolvable:$true] %s1243
      %1249 = dma.vmem_to_hbm [thread:$0]  %s1244, 256, %s8, [#allocation16], 128, 128, 8
    $region68: #{tpu_custom_call.1} parent=1 // pred_fallthru
      _
    // Predicated region
    $region69: #{tpu_custom_call.1} parent=1 // pred_check
      _
    $region70: #{tpu_custom_call.1} parent=1 // pred_check_branch
      %1251 = sbr.rel (0) target = $region72
    $region71: #{tpu_custom_call.1} parent=1 // pred_region
      %1252 = dma.done [#allocation7], 1536
    $region72: #{tpu_custom_call.1} parent=1 // pred_fallthru
      _
    // Predicated region
    $region73: #{tpu_custom_call.1} parent=1 // pred_check
      _
    $region74: #{tpu_custom_call.1} parent=1 // pred_check_branch
      %1254 = sbr.rel (0) target = $region76
    $region75: #{tpu_custom_call.1} parent=1 // pred_region
      %1255 = dma.done [#allocation16], 256
    $region76: #{tpu_custom_call.1} parent=1 // pred_fallthru
      _
    // Predicated region
    $region77: #{tpu_custom_call.1} parent=1 // pred_check
      _
    $region78: #{tpu_custom_call.1} parent=1 // pred_check_branch
      %1257 = sbr.rel (0) target = $region80
    $region79: #{tpu_custom_call.1} parent=1 // pred_region
      %1258 = dma.done [#allocation16], 256
    $region80: #{tpu_custom_call.1} parent=1 // pred_fallthru
      _
    %1259 = vsyncpa [#allocation6], 1
    %1260 = vsyncpa [#allocation9], 1
    %1261 = vsyncpa [#allocation12], 1
    %1262 = vsyncpa [#allocation7], 1
    %1263 = vsyncpa [#allocation16], 1

</llo_original>
